<compile_context>
chip_gen: v7x
topology: tpu7x:2x2x1
jax: 0.10.0
libtpu: 0.0.40
codegen_flags: <defaults>
</compile_context>

<pallas_src>
import jax
import jax.numpy as jnp
import numpy as np
from jax.experimental import pallas as pl
from jax.experimental.pallas import tpu as pltpu


def rnn_kernel(x_ref, h00_ref, h01_ref,
               wih0_ref, whh0_ref, b0_ref,
               wih1_ref, whh1_ref, b1_ref,
               wlin_ref, blin_ref,
               out_ref,
               buf):
    """Whole forward pass (both RNN layers + linear head) in one invocation.

    x_ref:   (seq*batch_p, n_inputs)    -- batch zero-padded to sublane tile
    h00_ref: (batch_p, n_hidden)        -- layer-0 initial hidden state
    h01_ref: (batch_p, n_hidden)        -- layer-1 initial hidden state
    w*_ref:  pre-transposed to (in_dim, out_dim); b*_ref: (1, dim), b_ih+b_hh
    out_ref: (seq*batch_p, out_p)       -- out_p padded to 128 lanes
    buf:     (seq*batch_p, n_hidden) VMEM scratch:
             holds layer-0 pre-activations, overwritten block-by-block with
             layer-1 hidden outputs (the head's input slab).
    """
    batch = h00_ref.shape[0]
    seq = x_ref.shape[0] // batch

    # Hoist all weight/bias loads out of the fully unrolled recurrence.
    wih0 = wih0_ref[...]
    whh0 = whh0_ref[...]
    b0 = b0_ref[...]
    wih1 = wih1_ref[...]
    whh1 = whh1_ref[...]
    b1 = b1_ref[...]
    wlin = wlin_ref[...]
    blin = blin_ref[...]

    # Layer-0 input projection hoisted out of the recurrence: one lane-dense
    # (seq*batch_p, n_inputs) @ (n_inputs, n_hidden) MXU matmul.
    buf[...] = (jnp.dot(x_ref[...], wih0, preferred_element_type=jnp.float32)
                + b0)

    def l0_step(t, h):
        # buf rows [t*batch, (t+1)*batch) hold pre-activation for step t.
        rows = pl.ds(t * batch, batch)
        return jnp.tanh(buf[rows, :]
                        + jnp.dot(h, whh0, preferred_element_type=jnp.float32))

    def l1_step(t, h0_out_t, h):
        # Layer-1 input projection is independent of the serial state `h`, so
        # it sits off the critical chain and overlaps with the matmul->tanh
        # chains of both layers.
        p1 = jnp.dot(h0_out_t, wih1, preferred_element_type=jnp.float32) + b1
        h_new = jnp.tanh(p1 + jnp.dot(h, whh1,
                                      preferred_element_type=jnp.float32))
        # Overwrite the (already consumed) pre-activation block in place: the
        # final buf slab is the layer-1 output sequence for the linear head.
        buf[pl.ds(t * batch, batch), :] = h_new
        return h_new

    # Wavefront-interleaved recurrence (seq is a small static constant ->
    # full unroll; hidden states stay in vregs, no per-step VMEM round trip).
    h1s = h01_ref[...]
    h0_prev = l0_step(0, h00_ref[...])          # layer-0 step 0
    for w in range(1, seq):
        h0_new = l0_step(w, h0_prev)            # layer-0 step w
        h1s = l1_step(w - 1, h0_prev, h1s)      # layer-1 step w-1 (independent)
        h0_prev = h0_new
    h1s = l1_step(seq - 1, h0_prev, h1s)        # drain layer-1

    # Linear head: single 2-D matmul + one lane-dense (128-wide) slab store.
    y = jnp.dot(buf[...], wlin, preferred_element_type=jnp.float32) + blin
    out_ref[...] = y.astype(out_ref.dtype)


def rnn_forward(x, h0, params):
    seq, batch, n_inputs = x.shape
    n_layers, _, n_hidden = h0.shape
    n_output = params['w_lin'].shape[0]
    assert n_layers == 2

    # Pad batch to a whole f32 sublane tile (8) and the head output width to a
    # whole lane tile (128).  Padded rows/cols are zero and sliced off below;
    # recurrence math is row-wise so padding never affects valid rows.
    batch_p = ((batch + 7) // 8) * 8
    out_p = ((n_output + 127) // 128) * 128

    x_p = jnp.pad(x, ((0, 0), (0, batch_p - batch), (0, 0)))
    h0_p = jnp.pad(h0, ((0, 0), (0, batch_p - batch), (0, 0)))
    x2d = x_p.reshape(seq * batch_p, n_inputs)

    wlin_p = jnp.pad(params['w_lin'].T, ((0, 0), (0, out_p - n_output)))
    blin_p = jnp.pad(params['b_lin'], ((0, out_p - n_output),)).reshape(1, -1)

    args = (
        x2d, h0_p[0], h0_p[1],
        params['w_ih0'].T, params['w_hh0'].T,
        (params['b_ih0'] + params['b_hh0']).reshape(1, -1),
        params['w_ih1'].T, params['w_hh1'].T,
        (params['b_ih1'] + params['b_hh1']).reshape(1, -1),
        wlin_p, blin_p,
    )

    vmem = pl.BlockSpec(memory_space=pltpu.MemorySpace.VMEM)
    y2d = pl.pallas_call(
        rnn_kernel,
        out_shape=jax.ShapeDtypeStruct((seq * batch_p, out_p), x.dtype),
        in_specs=[vmem] * len(args),
        out_specs=vmem,
        scratch_shapes=[
            pltpu.VMEM((seq * batch_p, n_hidden), jnp.float32),
        ],
    )(*args)
    return y2d.reshape(seq, batch_p, out_p)[:, :batch, :n_output]


def rnn_reference(x, h0, params):
    """Pure-JAX reference mirroring torch nn.RNN(tanh) + nn.Linear."""
    seq = x.shape[0]
    layer_in = x
    for l in range(2):
        wih, whh = params[f'w_ih{l}'], params[f'w_hh{l}']
        bih, bhh = params[f'b_ih{l}'], params[f'b_hh{l}']
        hl = h0[l]
        outs = []
        for t in range(seq):
            hl = jnp.tanh(layer_in[t] @ wih.T + bih + hl @ whh.T + bhh)
            outs.append(hl)
        layer_in = jnp.stack(outs)
    return layer_in @ params['w_lin'].T + params['b_lin']


if __name__ == "__main__":
    # Small shapes consistent with the module's forward.
    n_inputs, n_hidden, n_layers, batch, n_output, seq = 16, 32, 2, 4, 8, 8

    key = jax.random.PRNGKey(0)
    ks = jax.random.split(key, 12)
    s = 1.0 / np.sqrt(n_hidden)  # PyTorch-style uniform(-1/sqrt(H), 1/sqrt(H))

    params = {
        'w_ih0': jax.random.uniform(ks[0], (n_hidden, n_inputs), jnp.float32, -s, s),
        'w_hh0': jax.random.uniform(ks[1], (n_hidden, n_hidden), jnp.float32, -s, s),
        'b_ih0': jax.random.uniform(ks[2], (n_hidden,), jnp.float32, -s, s),
        'b_hh0': jax.random.uniform(ks[3], (n_hidden,), jnp.float32, -s, s),
        'w_ih1': jax.random.uniform(ks[4], (n_hidden, n_hidden), jnp.float32, -s, s),
        'w_hh1': jax.random.uniform(ks[5], (n_hidden, n_hidden), jnp.float32, -s, s),
        'b_ih1': jax.random.uniform(ks[6], (n_hidden,), jnp.float32, -s, s),
        'b_hh1': jax.random.uniform(ks[7], (n_hidden,), jnp.float32, -s, s),
        'w_lin': jax.random.uniform(ks[8], (n_output, n_hidden), jnp.float32, -s, s),
        'b_lin': jax.random.uniform(ks[9], (n_output,), jnp.float32, -s, s),
    }

    x = jax.random.normal(ks[10], (seq, batch, n_inputs), jnp.float32)
    h0 = jax.random.normal(ks[11], (n_layers, batch, n_hidden), jnp.float32)

    y = rnn_forward(x, h0, params)
    y = jax.block_until_ready(y)

    y_ref = rnn_reference(x, h0, params)
    np.testing.assert_allclose(np.asarray(y), np.asarray(y_ref), rtol=1e-5, atol=1e-5)

    print("KERNEL_OK")
</pallas_src>

<mosaic_0001>
module attributes {stable_mosaic.version = 11 : i64} {
  func.func @rnn_kernel(%arg0: memref<64x16xf32, #tpu.memory_space<vmem>>, %arg1: memref<8x32xf32, #tpu.memory_space<vmem>>, %arg2: memref<8x32xf32, #tpu.memory_space<vmem>>, %arg3: memref<16x32xf32, #tpu.memory_space<vmem>>, %arg4: memref<32x32xf32, #tpu.memory_space<vmem>>, %arg5: memref<1x32xf32, #tpu.memory_space<vmem>>, %arg6: memref<32x32xf32, #tpu.memory_space<vmem>>, %arg7: memref<32x32xf32, #tpu.memory_space<vmem>>, %arg8: memref<1x32xf32, #tpu.memory_space<vmem>>, %arg9: memref<32x128xf32, #tpu.memory_space<vmem>>, %arg10: memref<1x128xf32, #tpu.memory_space<vmem>>, %arg11: memref<64x128xf32, #tpu.memory_space<vmem>>, %arg12: memref<64x32xf32, #tpu.memory_space<vmem>>) attributes {dimension_semantics = [], scalar_prefetch = 0 : i64, scratch_operands = 1 : i64, tpu.core_type = #tpu.core_type<tc>} {
    %c0 = arith.constant 0 : index
    %c0_0 = arith.constant 0 : index
    %0 = vector.load %arg3[%c0, %c0_0] : memref<16x32xf32, #tpu.memory_space<vmem>>, vector<16x32xf32>
    %c0_1 = arith.constant 0 : index
    %c0_2 = arith.constant 0 : index
    %1 = vector.load %arg4[%c0_1, %c0_2] : memref<32x32xf32, #tpu.memory_space<vmem>>, vector<32x32xf32>
    %c0_3 = arith.constant 0 : index
    %c0_4 = arith.constant 0 : index
    %2 = vector.load %arg5[%c0_3, %c0_4] : memref<1x32xf32, #tpu.memory_space<vmem>>, vector<1x32xf32>
    %c0_5 = arith.constant 0 : index
    %c0_6 = arith.constant 0 : index
    %3 = vector.load %arg6[%c0_5, %c0_6] : memref<32x32xf32, #tpu.memory_space<vmem>>, vector<32x32xf32>
    %c0_7 = arith.constant 0 : index
    %c0_8 = arith.constant 0 : index
    %4 = vector.load %arg7[%c0_7, %c0_8] : memref<32x32xf32, #tpu.memory_space<vmem>>, vector<32x32xf32>
    %c0_9 = arith.constant 0 : index
    %c0_10 = arith.constant 0 : index
    %5 = vector.load %arg8[%c0_9, %c0_10] : memref<1x32xf32, #tpu.memory_space<vmem>>, vector<1x32xf32>
    %c0_11 = arith.constant 0 : index
    %c0_12 = arith.constant 0 : index
    %6 = vector.load %arg9[%c0_11, %c0_12] : memref<32x128xf32, #tpu.memory_space<vmem>>, vector<32x128xf32>
    %c0_13 = arith.constant 0 : index
    %c0_14 = arith.constant 0 : index
    %7 = vector.load %arg10[%c0_13, %c0_14] : memref<1x128xf32, #tpu.memory_space<vmem>>, vector<1x128xf32>
    %c0_15 = arith.constant 0 : index
    %c0_16 = arith.constant 0 : index
    %8 = vector.load %arg0[%c0_15, %c0_16] : memref<64x16xf32, #tpu.memory_space<vmem>>, vector<64x16xf32>
    %cst = arith.constant dense<0.000000e+00> : vector<64x32xf32>
    %9 = tpu.matmul %8, %0, %cst {dimension_numbers = #tpu.dot_dimension_numbers<[1], [0], [0], [1], [0, 0, 1, 1], [], []>} : vector<64x16xf32>, vector<16x32xf32>, vector<64x32xf32> -> vector<64x32xf32>
    %10 = vector.broadcast %2 : vector<1x32xf32> to vector<64x32xf32>
    %11 = arith.addf %9, %10 : vector<64x32xf32>
    %c0_17 = arith.constant 0 : index
    %c0_18 = arith.constant 0 : index
    %12 = vector.load %arg12[%c0_17, %c0_18] : memref<64x32xf32, #tpu.memory_space<vmem>>, vector<64x32xf32>
    tpu.vector_store %arg12[%c0_17, %c0_18], %11 {strides = array<i32>} : memref<64x32xf32, #tpu.memory_space<vmem>>, vector<64x32xf32>,
    %c0_19 = arith.constant 0 : index
    %c0_20 = arith.constant 0 : index
    %13 = vector.load %arg2[%c0_19, %c0_20] : memref<8x32xf32, #tpu.memory_space<vmem>>, vector<8x32xf32>
    %c0_21 = arith.constant 0 : index
    %c0_22 = arith.constant 0 : index
    %14 = vector.load %arg1[%c0_21, %c0_22] : memref<8x32xf32, #tpu.memory_space<vmem>>, vector<8x32xf32>
    %c0_23 = arith.constant 0 : index
    %c0_24 = arith.constant 0 : index
    %15 = vector.load %arg12[%c0_23, %c0_24] : memref<64x32xf32, #tpu.memory_space<vmem>>, vector<8x32xf32>
    %cst_25 = arith.constant dense<0.000000e+00> : vector<8x32xf32>
    %16 = tpu.matmul %14, %1, %cst_25 {dimension_numbers = #tpu.dot_dimension_numbers<[1], [0], [0], [1], [0, 0, 1, 1], [], []>} : vector<8x32xf32>, vector<32x32xf32>, vector<8x32xf32> -> vector<8x32xf32>
    %17 = arith.addf %15, %16 : vector<8x32xf32>
    %18 = math.tanh %17 : vector<8x32xf32>
    %c8 = arith.constant 8 : index
    %c0_26 = arith.constant 0 : index
    %19 = vector.load %arg12[%c8, %c0_26] : memref<64x32xf32, #tpu.memory_space<vmem>>, vector<8x32xf32>
    %cst_27 = arith.constant dense<0.000000e+00> : vector<8x32xf32>
    %20 = tpu.matmul %18, %1, %cst_27 {dimension_numbers = #tpu.dot_dimension_numbers<[1], [0], [0], [1], [0, 0, 1, 1], [], []>} : vector<8x32xf32>, vector<32x32xf32>, vector<8x32xf32> -> vector<8x32xf32>
    %21 = arith.addf %19, %20 : vector<8x32xf32>
    %22 = math.tanh %21 : vector<8x32xf32>
    %cst_28 = arith.constant dense<0.000000e+00> : vector<8x32xf32>
    %23 = tpu.matmul %18, %3, %cst_28 {dimension_numbers = #tpu.dot_dimension_numbers<[1], [0], [0], [1], [0, 0, 1, 1], [], []>} : vector<8x32xf32>, vector<32x32xf32>, vector<8x32xf32> -> vector<8x32xf32>
    %24 = vector.broadcast %5 : vector<1x32xf32> to vector<8x32xf32>
    %25 = arith.addf %23, %24 : vector<8x32xf32>
    %cst_29 = arith.constant dense<0.000000e+00> : vector<8x32xf32>
    %26 = tpu.matmul %13, %4, %cst_29 {dimension_numbers = #tpu.dot_dimension_numbers<[1], [0], [0], [1], [0, 0, 1, 1], [], []>} : vector<8x32xf32>, vector<32x32xf32>, vector<8x32xf32> -> vector<8x32xf32>
    %27 = arith.addf %25, %26 : vector<8x32xf32>
    %28 = math.tanh %27 : vector<8x32xf32>
    %c0_30 = arith.constant 0 : index
    %c0_31 = arith.constant 0 : index
    %29 = vector.load %arg12[%c0_30, %c0_31] : memref<64x32xf32, #tpu.memory_space<vmem>>, vector<8x32xf32>
    tpu.vector_store %arg12[%c0_30, %c0_31], %28 {strides = array<i32>} : memref<64x32xf32, #tpu.memory_space<vmem>>, vector<8x32xf32>,
    %c16 = arith.constant 16 : index
    %c0_32 = arith.constant 0 : index
    %30 = vector.load %arg12[%c16, %c0_32] : memref<64x32xf32, #tpu.memory_space<vmem>>, vector<8x32xf32>
    %cst_33 = arith.constant dense<0.000000e+00> : vector<8x32xf32>
    %31 = tpu.matmul %22, %1, %cst_33 {dimension_numbers = #tpu.dot_dimension_numbers<[1], [0], [0], [1], [0, 0, 1, 1], [], []>} : vector<8x32xf32>, vector<32x32xf32>, vector<8x32xf32> -> vector<8x32xf32>
    %32 = arith.addf %30, %31 : vector<8x32xf32>
    %33 = math.tanh %32 : vector<8x32xf32>
    %cst_34 = arith.constant dense<0.000000e+00> : vector<8x32xf32>
    %34 = tpu.matmul %22, %3, %cst_34 {dimension_numbers = #tpu.dot_dimension_numbers<[1], [0], [0], [1], [0, 0, 1, 1], [], []>} : vector<8x32xf32>, vector<32x32xf32>, vector<8x32xf32> -> vector<8x32xf32>
    %35 = vector.broadcast %5 : vector<1x32xf32> to vector<8x32xf32>
    %36 = arith.addf %34, %35 : vector<8x32xf32>
    %cst_35 = arith.constant dense<0.000000e+00> : vector<8x32xf32>
    %37 = tpu.matmul %28, %4, %cst_35 {dimension_numbers = #tpu.dot_dimension_numbers<[1], [0], [0], [1], [0, 0, 1, 1], [], []>} : vector<8x32xf32>, vector<32x32xf32>, vector<8x32xf32> -> vector<8x32xf32>
    %38 = arith.addf %36, %37 : vector<8x32xf32>
    %39 = math.tanh %38 : vector<8x32xf32>
    %c8_36 = arith.constant 8 : index
    %c0_37 = arith.constant 0 : index
    %40 = vector.load %arg12[%c8_36, %c0_37] : memref<64x32xf32, #tpu.memory_space<vmem>>, vector<8x32xf32>
    tpu.vector_store %arg12[%c8_36, %c0_37], %39 {strides = array<i32>} : memref<64x32xf32, #tpu.memory_space<vmem>>, vector<8x32xf32>,
    %c24 = arith.constant 24 : index
    %c0_38 = arith.constant 0 : index
    %41 = vector.load %arg12[%c24, %c0_38] : memref<64x32xf32, #tpu.memory_space<vmem>>, vector<8x32xf32>
    %cst_39 = arith.constant dense<0.000000e+00> : vector<8x32xf32>
    %42 = tpu.matmul %33, %1, %cst_39 {dimension_numbers = #tpu.dot_dimension_numbers<[1], [0], [0], [1], [0, 0, 1, 1], [], []>} : vector<8x32xf32>, vector<32x32xf32>, vector<8x32xf32> -> vector<8x32xf32>
    %43 = arith.addf %41, %42 : vector<8x32xf32>
    %44 = math.tanh %43 : vector<8x32xf32>
    %cst_40 = arith.constant dense<0.000000e+00> : vector<8x32xf32>
    %45 = tpu.matmul %33, %3, %cst_40 {dimension_numbers = #tpu.dot_dimension_numbers<[1], [0], [0], [1], [0, 0, 1, 1], [], []>} : vector<8x32xf32>, vector<32x32xf32>, vector<8x32xf32> -> vector<8x32xf32>
    %46 = vector.broadcast %5 : vector<1x32xf32> to vector<8x32xf32>
    %47 = arith.addf %45, %46 : vector<8x32xf32>
    %cst_41 = arith.constant dense<0.000000e+00> : vector<8x32xf32>
    %48 = tpu.matmul %39, %4, %cst_41 {dimension_numbers = #tpu.dot_dimension_numbers<[1], [0], [0], [1], [0, 0, 1, 1], [], []>} : vector<8x32xf32>, vector<32x32xf32>, vector<8x32xf32> -> vector<8x32xf32>
    %49 = arith.addf %47, %48 : vector<8x32xf32>
    %50 = math.tanh %49 : vector<8x32xf32>
    %c16_42 = arith.constant 16 : index
    %c0_43 = arith.constant 0 : index
    %51 = vector.load %arg12[%c16_42, %c0_43] : memref<64x32xf32, #tpu.memory_space<vmem>>, vector<8x32xf32>
    tpu.vector_store %arg12[%c16_42, %c0_43], %50 {strides = array<i32>} : memref<64x32xf32, #tpu.memory_space<vmem>>, vector<8x32xf32>,
    %c32 = arith.constant 32 : index
    %c0_44 = arith.constant 0 : index
    %52 = vector.load %arg12[%c32, %c0_44] : memref<64x32xf32, #tpu.memory_space<vmem>>, vector<8x32xf32>
    %cst_45 = arith.constant dense<0.000000e+00> : vector<8x32xf32>
    %53 = tpu.matmul %44, %1, %cst_45 {dimension_numbers = #tpu.dot_dimension_numbers<[1], [0], [0], [1], [0, 0, 1, 1], [], []>} : vector<8x32xf32>, vector<32x32xf32>, vector<8x32xf32> -> vector<8x32xf32>
    %54 = arith.addf %52, %53 : vector<8x32xf32>
    %55 = math.tanh %54 : vector<8x32xf32>
    %cst_46 = arith.constant dense<0.000000e+00> : vector<8x32xf32>
    %56 = tpu.matmul %44, %3, %cst_46 {dimension_numbers = #tpu.dot_dimension_numbers<[1], [0], [0], [1], [0, 0, 1, 1], [], []>} : vector<8x32xf32>, vector<32x32xf32>, vector<8x32xf32> -> vector<8x32xf32>
    %57 = vector.broadcast %5 : vector<1x32xf32> to vector<8x32xf32>
    %58 = arith.addf %56, %57 : vector<8x32xf32>
    %cst_47 = arith.constant dense<0.000000e+00> : vector<8x32xf32>
    %59 = tpu.matmul %50, %4, %cst_47 {dimension_numbers = #tpu.dot_dimension_numbers<[1], [0], [0], [1], [0, 0, 1, 1], [], []>} : vector<8x32xf32>, vector<32x32xf32>, vector<8x32xf32> -> vector<8x32xf32>
    %60 = arith.addf %58, %59 : vector<8x32xf32>
    %61 = math.tanh %60 : vector<8x32xf32>
    %c24_48 = arith.constant 24 : index
    %c0_49 = arith.constant 0 : index
    %62 = vector.load %arg12[%c24_48, %c0_49] : memref<64x32xf32, #tpu.memory_space<vmem>>, vector<8x32xf32>
    tpu.vector_store %arg12[%c24_48, %c0_49], %61 {strides = array<i32>} : memref<64x32xf32, #tpu.memory_space<vmem>>, vector<8x32xf32>,
    %c40 = arith.constant 40 : index
    %c0_50 = arith.constant 0 : index
    %63 = vector.load %arg12[%c40, %c0_50] : memref<64x32xf32, #tpu.memory_space<vmem>>, vector<8x32xf32>
    %cst_51 = arith.constant dense<0.000000e+00> : vector<8x32xf32>
    %64 = tpu.matmul %55, %1, %cst_51 {dimension_numbers = #tpu.dot_dimension_numbers<[1], [0], [0], [1], [0, 0, 1, 1], [], []>} : vector<8x32xf32>, vector<32x32xf32>, vector<8x32xf32> -> vector<8x32xf32>
    %65 = arith.addf %63, %64 : vector<8x32xf32>
    %66 = math.tanh %65 : vector<8x32xf32>
    %cst_52 = arith.constant dense<0.000000e+00> : vector<8x32xf32>
    %67 = tpu.matmul %55, %3, %cst_52 {dimension_numbers = #tpu.dot_dimension_numbers<[1], [0], [0], [1], [0, 0, 1, 1], [], []>} : vector<8x32xf32>, vector<32x32xf32>, vector<8x32xf32> -> vector<8x32xf32>
    %68 = vector.broadcast %5 : vector<1x32xf32> to vector<8x32xf32>
    %69 = arith.addf %67, %68 : vector<8x32xf32>
    %cst_53 = arith.constant dense<0.000000e+00> : vector<8x32xf32>
    %70 = tpu.matmul %61, %4, %cst_53 {dimension_numbers = #tpu.dot_dimension_numbers<[1], [0], [0], [1], [0, 0, 1, 1], [], []>} : vector<8x32xf32>, vector<32x32xf32>, vector<8x32xf32> -> vector<8x32xf32>
    %71 = arith.addf %69, %70 : vector<8x32xf32>
    %72 = math.tanh %71 : vector<8x32xf32>
    %c32_54 = arith.constant 32 : index
    %c0_55 = arith.constant 0 : index
    %73 = vector.load %arg12[%c32_54, %c0_55] : memref<64x32xf32, #tpu.memory_space<vmem>>, vector<8x32xf32>
    tpu.vector_store %arg12[%c32_54, %c0_55], %72 {strides = array<i32>} : memref<64x32xf32, #tpu.memory_space<vmem>>, vector<8x32xf32>,
    %c48 = arith.constant 48 : index
    %c0_56 = arith.constant 0 : index
    %74 = vector.load %arg12[%c48, %c0_56] : memref<64x32xf32, #tpu.memory_space<vmem>>, vector<8x32xf32>
    %cst_57 = arith.constant dense<0.000000e+00> : vector<8x32xf32>
    %75 = tpu.matmul %66, %1, %cst_57 {dimension_numbers = #tpu.dot_dimension_numbers<[1], [0], [0], [1], [0, 0, 1, 1], [], []>} : vector<8x32xf32>, vector<32x32xf32>, vector<8x32xf32> -> vector<8x32xf32>
    %76 = arith.addf %74, %75 : vector<8x32xf32>
    %77 = math.tanh %76 : vector<8x32xf32>
    %cst_58 = arith.constant dense<0.000000e+00> : vector<8x32xf32>
    %78 = tpu.matmul %66, %3, %cst_58 {dimension_numbers = #tpu.dot_dimension_numbers<[1], [0], [0], [1], [0, 0, 1, 1], [], []>} : vector<8x32xf32>, vector<32x32xf32>, vector<8x32xf32> -> vector<8x32xf32>
    %79 = vector.broadcast %5 : vector<1x32xf32> to vector<8x32xf32>
    %80 = arith.addf %78, %79 : vector<8x32xf32>
    %cst_59 = arith.constant dense<0.000000e+00> : vector<8x32xf32>
    %81 = tpu.matmul %72, %4, %cst_59 {dimension_numbers = #tpu.dot_dimension_numbers<[1], [0], [0], [1], [0, 0, 1, 1], [], []>} : vector<8x32xf32>, vector<32x32xf32>, vector<8x32xf32> -> vector<8x32xf32>
    %82 = arith.addf %80, %81 : vector<8x32xf32>
    %83 = math.tanh %82 : vector<8x32xf32>
    %c40_60 = arith.constant 40 : index
    %c0_61 = arith.constant 0 : index
    %84 = vector.load %arg12[%c40_60, %c0_61] : memref<64x32xf32, #tpu.memory_space<vmem>>, vector<8x32xf32>
    tpu.vector_store %arg12[%c40_60, %c0_61], %83 {strides = array<i32>} : memref<64x32xf32, #tpu.memory_space<vmem>>, vector<8x32xf32>,
    %c56 = arith.constant 56 : index
    %c0_62 = arith.constant 0 : index
    %85 = vector.load %arg12[%c56, %c0_62] : memref<64x32xf32, #tpu.memory_space<vmem>>, vector<8x32xf32>
    %cst_63 = arith.constant dense<0.000000e+00> : vector<8x32xf32>
    %86 = tpu.matmul %77, %1, %cst_63 {dimension_numbers = #tpu.dot_dimension_numbers<[1], [0], [0], [1], [0, 0, 1, 1], [], []>} : vector<8x32xf32>, vector<32x32xf32>, vector<8x32xf32> -> vector<8x32xf32>
    %87 = arith.addf %85, %86 : vector<8x32xf32>
    %88 = math.tanh %87 : vector<8x32xf32>
    %cst_64 = arith.constant dense<0.000000e+00> : vector<8x32xf32>
    %89 = tpu.matmul %77, %3, %cst_64 {dimension_numbers = #tpu.dot_dimension_numbers<[1], [0], [0], [1], [0, 0, 1, 1], [], []>} : vector<8x32xf32>, vector<32x32xf32>, vector<8x32xf32> -> vector<8x32xf32>
    %90 = vector.broadcast %5 : vector<1x32xf32> to vector<8x32xf32>
    %91 = arith.addf %89, %90 : vector<8x32xf32>
    %cst_65 = arith.constant dense<0.000000e+00> : vector<8x32xf32>
    %92 = tpu.matmul %83, %4, %cst_65 {dimension_numbers = #tpu.dot_dimension_numbers<[1], [0], [0], [1], [0, 0, 1, 1], [], []>} : vector<8x32xf32>, vector<32x32xf32>, vector<8x32xf32> -> vector<8x32xf32>
    %93 = arith.addf %91, %92 : vector<8x32xf32>
    %94 = math.tanh %93 : vector<8x32xf32>
    %c48_66 = arith.constant 48 : index
    %c0_67 = arith.constant 0 : index
    %95 = vector.load %arg12[%c48_66, %c0_67] : memref<64x32xf32, #tpu.memory_space<vmem>>, vector<8x32xf32>
    tpu.vector_store %arg12[%c48_66, %c0_67], %94 {strides = array<i32>} : memref<64x32xf32, #tpu.memory_space<vmem>>, vector<8x32xf32>,
    %cst_68 = arith.constant dense<0.000000e+00> : vector<8x32xf32>
    %96 = tpu.matmul %88, %3, %cst_68 {dimension_numbers = #tpu.dot_dimension_numbers<[1], [0], [0], [1], [0, 0, 1, 1], [], []>} : vector<8x32xf32>, vector<32x32xf32>, vector<8x32xf32> -> vector<8x32xf32>
    %97 = vector.broadcast %5 : vector<1x32xf32> to vector<8x32xf32>
    %98 = arith.addf %96, %97 : vector<8x32xf32>
    %cst_69 = arith.constant dense<0.000000e+00> : vector<8x32xf32>
    %99 = tpu.matmul %94, %4, %cst_69 {dimension_numbers = #tpu.dot_dimension_numbers<[1], [0], [0], [1], [0, 0, 1, 1], [], []>} : vector<8x32xf32>, vector<32x32xf32>, vector<8x32xf32> -> vector<8x32xf32>
    %100 = arith.addf %98, %99 : vector<8x32xf32>
    %101 = math.tanh %100 : vector<8x32xf32>
    %c56_70 = arith.constant 56 : index
    %c0_71 = arith.constant 0 : index
    %102 = vector.load %arg12[%c56_70, %c0_71] : memref<64x32xf32, #tpu.memory_space<vmem>>, vector<8x32xf32>
    tpu.vector_store %arg12[%c56_70, %c0_71], %101 {strides = array<i32>} : memref<64x32xf32, #tpu.memory_space<vmem>>, vector<8x32xf32>,
    %c0_72 = arith.constant 0 : index
    %c0_73 = arith.constant 0 : index
    %103 = vector.load %arg12[%c0_72, %c0_73] : memref<64x32xf32, #tpu.memory_space<vmem>>, vector<64x32xf32>
    %cst_74 = arith.constant dense<0.000000e+00> : vector<64x128xf32>
    %104 = tpu.matmul %103, %6, %cst_74 {dimension_numbers = #tpu.dot_dimension_numbers<[1], [0], [0], [1], [0, 0, 1, 1], [], []>} : vector<64x32xf32>, vector<32x128xf32>, vector<64x128xf32> -> vector<64x128xf32>
    %105 = vector.broadcast %7 : vector<1x128xf32> to vector<64x128xf32>
    %106 = arith.addf %104, %105 : vector<64x128xf32>
    %c0_75 = arith.constant 0 : index
    %c0_76 = arith.constant 0 : index
    %107 = vector.load %arg11[%c0_75, %c0_76] : memref<64x128xf32, #tpu.memory_space<vmem>>, vector<64x128xf32>
    tpu.vector_store %arg11[%c0_75, %c0_76], %106 {strides = array<i32>} : memref<64x128xf32, #tpu.memory_space<vmem>>, vector<64x128xf32>,
    return
  }
}

</mosaic_0001>

<llo_original>
// kernel: tpu_custom_call.1
$region0: #{tpu_custom_call.1}
  #allocation0 [shape = 'u32[]', space=smem, size = 0x4, offset = 0x4, fixed_abs, tag = 'smem constant byte address 0x4 - core index']
  #allocation1 [shape = 'u32[144,128]{1,0:T(1,128)}', space=vmem, size = 0x12000, scoped, tag = 'internal scratch']
  #allocation2 [shape = 'f32[64,32]{1,0:T(8,128)}', space=vmem, size = 0x8000, scoped, tag = 'scratch operand']
  %s0 = inlined_call_operand.vmem [shape: f32[64,16], index: 0, kind: input, shape index: {}]
  %s1 = inlined_call_operand.hbm [shape: f32[8,32], index: 1, kind: input, shape index: {}]
  %s2 = inlined_call_operand.hbm [shape: f32[8,32], index: 2, kind: input, shape index: {}]
  %s3 = inlined_call_operand.hbm [shape: f32[16,32], index: 3, kind: input, shape index: {}]
  %s4 = inlined_call_operand.vmem [shape: f32[32,32], index: 4, kind: input, shape index: {}]
  %s5 = inlined_call_operand.vmem [shape: f32[1,32], index: 5, kind: input, shape index: {}]
  %s6 = inlined_call_operand.vmem [shape: f32[32,32], index: 6, kind: input, shape index: {}]
  %s7 = inlined_call_operand.vmem [shape: f32[32,32], index: 7, kind: input, shape index: {}]
  %s8 = inlined_call_operand.vmem [shape: f32[1,32], index: 8, kind: input, shape index: {}]
  %s9 = inlined_call_operand.hbm [shape: f32[32,128], index: 9, kind: input, shape index: {}]
  %s10 = inlined_call_operand.vmem [shape: f32[1,128], index: 10, kind: input, shape index: {}]
  %s11 = inlined_call_operand.hbm [shape: f32[64,128], index: 11, kind: output, shape index: {}]
  %s12 = sld [smem:[#allocation0]]
  $region70: #{tpu_custom_call.1} parent=0
    _
  %s14 = ssub.s32 1, %s12
  %s15 = scalar_select 0, %s14, %s12
  $region1: #{tpu_custom_call.1} parent=0
    #allocation3 [shape = 'u8[4096]{0}', space=vmem, size = 0x1000, scoped, tag = 'input window, operand 1, single buffered']
    #allocation4 [shape = 's32[1]{0}', space=sflag, size = 0x4, scoped, tag = 'scoped memory for tpu_custom_call.1']
    #allocation5 [shape = 's32[1]{0}', space=sflag, size = 0x4, scoped, tag = 'scoped memory for tpu_custom_call.1']
    #allocation6 [shape = 'u8[4096]{0}', space=vmem, size = 0x1000, scoped, tag = 'input window, operand 2, single buffered']
    #allocation7 [shape = 's32[1]{0}', space=sflag, size = 0x4, scoped, tag = 'scoped memory for tpu_custom_call.1']
    #allocation8 [shape = 'u8[8192]{0}', space=vmem, size = 0x2000, scoped, tag = 'input window, operand 3, single buffered']
    #allocation9 [shape = 'u8[16384]{0}', space=vmem, size = 0x4000, scoped, tag = 'input window, operand 9, single buffered']
    #allocation10 [shape = 's32[1]{0}', space=sflag, size = 0x4, scoped, tag = 'scoped memory for tpu_custom_call.1']
    #allocation11 [shape = 'u8[32768]{0}', space=vmem, size = 0x8000, scoped, tag = 'output window, operand 0, single buffered']
    %16 = vsyncpa [#allocation4], 0
    %17 = vsyncpa [#allocation7], 0
    %18 = vsyncpa [#allocation10], 0
    %19 = vsyncpa [#allocation5], 0
    // Predicated region
    $region2: #{tpu_custom_call.1} parent=1 // pred_check
      _
    $region3: #{tpu_custom_call.1} parent=1 // pred_check_branch
      %21 = sbr.rel (0) target = $region5
    $region4: #{tpu_custom_call.1} parent=1 // pred_region
      _
    $region5: #{tpu_custom_call.1} parent=1 // pred_fallthru
      _
    // Predicated region
    $region6: #{tpu_custom_call.1} parent=1 // pred_check
      _
    $region7: #{tpu_custom_call.1} parent=1 // pred_check_branch
      %23 = sbr.rel (0) target = $region9
    $region8: #{tpu_custom_call.1} parent=1 // pred_region
      %s25 = ssub.s32 128, 128
      %26 = vsyncadd [#allocation4], %s25
      %s28 = sshll.u32 [#allocation3], 4
      %s29 = int_to_ptr.vmem [resolvable:$true] %s28
      %31 = dma.hbm_to_vmem [thread:$0]  %s1, 128, %s29, [#allocation4]
    $region9: #{tpu_custom_call.1} parent=1 // pred_fallthru
      _
    // Predicated region
    $region10: #{tpu_custom_call.1} parent=1 // pred_check
      _
    $region11: #{tpu_custom_call.1} parent=1 // pred_check_branch
      %33 = sbr.rel (0) target = $region13
    $region12: #{tpu_custom_call.1} parent=1 // pred_region
      %s35 = ssub.s32 128, 128
      %36 = vsyncadd [#allocation7], %s35
      %s38 = sshll.u32 [#allocation6], 4
      %s39 = int_to_ptr.vmem [resolvable:$true] %s38
      %41 = dma.hbm_to_vmem [thread:$0]  %s2, 128, %s39, [#allocation7]
    $region13: #{tpu_custom_call.1} parent=1 // pred_fallthru
      _
    // Predicated region
    $region14: #{tpu_custom_call.1} parent=1 // pred_check
      _
    $region15: #{tpu_custom_call.1} parent=1 // pred_check_branch
      %43 = sbr.rel (0) target = $region17
    $region16: #{tpu_custom_call.1} parent=1 // pred_region
      %s45 = ssub.s32 256, 256
      %46 = vsyncadd [#allocation7], %s45
      %s47 = sshll.u32 [#allocation8], 4
      %s48 = int_to_ptr.vmem [resolvable:$true] %s47
      %53 = dma.hbm_to_vmem [thread:$0]  %s3, 256, %s48, [#allocation7], 128, 128, 8
    $region17: #{tpu_custom_call.1} parent=1 // pred_fallthru
      _
    // Predicated region
    $region18: #{tpu_custom_call.1} parent=1 // pred_check
      _
    $region19: #{tpu_custom_call.1} parent=1 // pred_check_branch
      %55 = sbr.rel (0) target = $region21
    $region20: #{tpu_custom_call.1} parent=1 // pred_region
      _
    $region21: #{tpu_custom_call.1} parent=1 // pred_fallthru
      _
    // Predicated region
    $region22: #{tpu_custom_call.1} parent=1 // pred_check
      _
    $region23: #{tpu_custom_call.1} parent=1 // pred_check_branch
      %57 = sbr.rel (0) target = $region25
    $region24: #{tpu_custom_call.1} parent=1 // pred_region
      _
    $region25: #{tpu_custom_call.1} parent=1 // pred_fallthru
      _
    // Predicated region
    $region26: #{tpu_custom_call.1} parent=1 // pred_check
      _
    $region27: #{tpu_custom_call.1} parent=1 // pred_check_branch
      %59 = sbr.rel (0) target = $region29
    $region28: #{tpu_custom_call.1} parent=1 // pred_region
      _
    $region29: #{tpu_custom_call.1} parent=1 // pred_fallthru
      _
    // Predicated region
    $region30: #{tpu_custom_call.1} parent=1 // pred_check
      _
    $region31: #{tpu_custom_call.1} parent=1 // pred_check_branch
      %61 = sbr.rel (0) target = $region33
    $region32: #{tpu_custom_call.1} parent=1 // pred_region
      _
    $region33: #{tpu_custom_call.1} parent=1 // pred_fallthru
      _
    // Predicated region
    $region34: #{tpu_custom_call.1} parent=1 // pred_check
      _
    $region35: #{tpu_custom_call.1} parent=1 // pred_check_branch
      %63 = sbr.rel (0) target = $region37
    $region36: #{tpu_custom_call.1} parent=1 // pred_region
      _
    $region37: #{tpu_custom_call.1} parent=1 // pred_fallthru
      _
    // Predicated region
    $region38: #{tpu_custom_call.1} parent=1 // pred_check
      _
    $region39: #{tpu_custom_call.1} parent=1 // pred_check_branch
      %65 = sbr.rel (0) target = $region41
    $region40: #{tpu_custom_call.1} parent=1 // pred_region
      %s67 = ssub.s32 512, 512
      %68 = vsyncadd [#allocation10], %s67
      %s69 = sshll.u32 [#allocation9], 4
      %s70 = int_to_ptr.vmem [resolvable:$true] %s69
      %75 = dma.hbm_to_vmem [thread:$0]  %s9, 512, %s70, [#allocation10], 128, 128, 8
    $region41: #{tpu_custom_call.1} parent=1 // pred_fallthru
      _
    // Predicated region
    $region42: #{tpu_custom_call.1} parent=1 // pred_check
      _
    $region43: #{tpu_custom_call.1} parent=1 // pred_check_branch
      %77 = sbr.rel (0) target = $region45
    $region44: #{tpu_custom_call.1} parent=1 // pred_region
      _
    $region45: #{tpu_custom_call.1} parent=1 // pred_fallthru
      _
    // Predicated region
    $region46: #{tpu_custom_call.1} parent=1 // pred_check
      _
    $region47: #{tpu_custom_call.1} parent=1 // pred_check_branch
      %79 = sbr.rel (0) target = $region49
    $region48: #{tpu_custom_call.1} parent=1 // pred_region
      %80 = dma.done [#allocation4], 128
    $region49: #{tpu_custom_call.1} parent=1 // pred_fallthru
      _
    // Predicated region
    $region50: #{tpu_custom_call.1} parent=1 // pred_check
      _
    $region51: #{tpu_custom_call.1} parent=1 // pred_check_branch
      %82 = sbr.rel (0) target = $region53
    $region52: #{tpu_custom_call.1} parent=1 // pred_region
      %83 = dma.done [#allocation7], 128
    $region53: #{tpu_custom_call.1} parent=1 // pred_fallthru
      _
    // Predicated region
    $region54: #{tpu_custom_call.1} parent=1 // pred_check
      _
    $region55: #{tpu_custom_call.1} parent=1 // pred_check_branch
      %85 = sbr.rel (0) target = $region57
    $region56: #{tpu_custom_call.1} parent=1 // pred_region
      %86 = dma.done [#allocation7], 256
    $region57: #{tpu_custom_call.1} parent=1 // pred_fallthru
      _
    // Predicated region
    $region58: #{tpu_custom_call.1} parent=1 // pred_check
      _
    $region59: #{tpu_custom_call.1} parent=1 // pred_check_branch
      %88 = sbr.rel (0) target = $region61
    $region60: #{tpu_custom_call.1} parent=1 // pred_region
      %89 = dma.done [#allocation10], 512
    $region61: #{tpu_custom_call.1} parent=1 // pred_fallthru
      _
    %v90 = vld [vmem:[#allocation8] sm:$0xff]
    %v91 = vld [vmem:[#allocation8 + $0x8] sm:$0xff]
    %v92 = vld [vmem:[%s4] sm:$0xff]
    %v93 = vld [vmem:[%s4 + $0x8] sm:$0xff]
    %v94 = vld [vmem:[%s4 + $0x10] sm:$0xff]
    %v95 = vld [vmem:[%s4 + $0x18] sm:$0xff]
    %v96 = vld [vmem:[%s5] sm:$0x1]
    %v97 = vld [vmem:[%s6] sm:$0xff]
    %v98 = vld [vmem:[%s6 + $0x8] sm:$0xff]
    %v99 = vld [vmem:[%s6 + $0x10] sm:$0xff]
    %v100 = vld [vmem:[%s6 + $0x18] sm:$0xff]
    %v101 = vld [vmem:[%s7] sm:$0xff]
    %v102 = vld [vmem:[%s7 + $0x8] sm:$0xff]
    %v103 = vld [vmem:[%s7 + $0x10] sm:$0xff]
    %v104 = vld [vmem:[%s7 + $0x18] sm:$0xff]
    %v105 = vld [vmem:[%s8] sm:$0x1]
    %v106 = vld [vmem:[#allocation9] sm:$0xff]
    %v107 = vld [vmem:[#allocation9 + $0x8] sm:$0xff]
    %v108 = vld [vmem:[#allocation9 + $0x10] sm:$0xff]
    %v109 = vld [vmem:[#allocation9 + $0x18] sm:$0xff]
    %v110 = vld [vmem:[%s10] sm:$0x1]
    %v111 = vld [vmem:[%s0] sm:$0xff]
    %v112 = vld [vmem:[%s0 + $0x8] sm:$0xff]
    %v113 = vld [vmem:[%s0 + $0x10] sm:$0xff]
    %v114 = vld [vmem:[%s0 + $0x18] sm:$0xff]
    %v115 = vld [vmem:[%s0 + $0x20] sm:$0xff]
    %v116 = vld [vmem:[%s0 + $0x28] sm:$0xff]
    %v117 = vld [vmem:[%s0 + $0x30] sm:$0xff]
    %v118 = vld [vmem:[%s0 + $0x38] sm:$0xff]
    %v120 = vlaneseq
    %v121 = vshrl.u32 %v120, 7
    %v122 = vsub.s32 0, %v121
    %v123 = vrot.slane %v96, %v122
    %vm125 = vcmask 130048
    %v127 = vsel %vm125, %v111, 0
    %v130 = vsel %vm125, %v112, 0
    %v133 = vsel %vm125, %v113, 0
    %v136 = vsel %vm125, %v114, 0
    %v139 = vsel %vm125, %v115, 0
    %v142 = vsel %vm125, %v116, 0
    %v145 = vsel %vm125, %v117, 0
    %v148 = vsel %vm125, %v118, 0
    %150 = vmatprep.subr.mxu0 0.0
    %151 = vmatpush1.msra.mxu0 %v90
    %152 = vmatprep.subr.mxu0 0.0
    %153 = vmatpush1.msra.mxu0 %v91
    %154 = vmatprep.subr.mxu0 0.0
    %155 = vmatpush1.msra.mxu0 0.0
    %156 = vmatprep.subr.mxu0 0.0
    %157 = vmatpush1.msra.mxu0 0.0
    %158 = vmatprep.subr.mxu0 0.0
    %159 = vmatpush1.msra.mxu0 0.0
    %160 = vmatprep.subr.mxu0 0.0
    %161 = vmatpush1.msra.mxu0 0.0
    %162 = vmatprep.subr.mxu0 0.0
    %163 = vmatpush1.msra.mxu0 0.0
    %164 = vmatprep.subr.mxu0 0.0
    %165 = vmatpush1.msra.mxu0 0.0
    %166 = vmatprep.subr.mxu0 0.0
    %167 = vmatpush1.msra.mxu0 0.0
    %168 = vmatprep.subr.mxu0 0.0
    %169 = vmatpush1.msra.mxu0 0.0
    %170 = vmatprep.subr.mxu0 0.0
    %171 = vmatpush1.msra.mxu0 0.0
    %172 = vmatprep.subr.mxu0 0.0
    %173 = vmatpush1.msra.mxu0 0.0
    %174 = vmatprep.subr.mxu0 0.0
    %175 = vmatpush1.msra.mxu0 0.0
    %176 = vmatprep.subr.mxu0 0.0
    %177 = vmatpush1.msra.mxu0 0.0
    %178 = vmatprep.subr.mxu0 0.0
    %179 = vmatpush1.msra.mxu0 0.0
    %180 = vmatprep.subr.mxu0 0.0
    %181 = vmatpush1.msra.mxu0 0.0
    %182 = vmatprep.subr.mxu0 0.0
    %183 = vmatpush1.msra.mxu0 0.0
    %184 = vmatprep.subr.mxu0 0.0
    %185 = vmatpush1.msra.mxu0 0.0
    %186 = vmatprep.subr.mxu0 0.0
    %187 = vmatpush1.msra.mxu0 0.0
    %188 = vmatprep.subr.mxu0 0.0
    %189 = vmatpush1.msra.mxu0 0.0
    %190 = vmatprep.subr.mxu0 0.0
    %191 = vmatpush1.msra.mxu0 0.0
    %192 = vmatprep.subr.mxu0 0.0
    %193 = vmatpush1.msra.mxu0 0.0
    %194 = vmatprep.subr.mxu0 0.0
    %195 = vmatpush1.msra.mxu0 0.0
    %196 = vmatprep.subr.mxu0 0.0
    %197 = vmatpush1.msra.mxu0 0.0
    %198 = vmatprep.subr.mxu0 0.0
    %199 = vmatpush1.msra.mxu0 0.0
    %200 = vmatprep.subr.mxu0 0.0
    %201 = vmatpush1.msra.mxu0 0.0
    %202 = vmatprep.subr.mxu0 0.0
    %203 = vmatpush1.msra.mxu0 0.0
    %204 = vmatprep.subr.mxu0 0.0
    %205 = vmatpush1.msra.mxu0 0.0
    %206 = vmatprep.subr.mxu0 0.0
    %207 = vmatpush1.msra.mxu0 0.0
    %208 = vmatprep.subr.mxu0 0.0
    %209 = vmatpush1.msra.mxu0 0.0
    %210 = vmatprep.subr.mxu0 0.0
    %211 = vmatpush1.msra.mxu0 0.0
    %212 = vmatprep.subr.mxu0 0.0
    %213 = vmatpush1.msra.mxu0 0.0
    %214 = vmatprep.mubr.f32.mxu0 0.0
    %215 = vmatmul.mubr.f32.gmra.mrb[0].mxu0 %v127
    %v216 = vpop.f32.mrb[0].mxu0
    %v217 = vadd.f32 %v123, %v216
    %v218 = vpop.f32.mrb[0].mxu0
    %219 = vmatprep.mubr.f32.mxu0 0.0
    %220 = vmatmul.mubr.f32.gmra.mrb[0].mxu0 %v130
    %v221 = vpop.f32.mrb[0].mxu0
    %v222 = vadd.f32 %v123, %v221
    %v223 = vpop.f32.mrb[0].mxu0
    %224 = vmatprep.mubr.f32.mxu0 0.0
    %225 = vmatmul.mubr.f32.gmra.mrb[0].mxu0 %v133
    %v226 = vpop.f32.mrb[0].mxu0
    %v227 = vadd.f32 %v123, %v226
    %v228 = vpop.f32.mrb[0].mxu0
    %229 = vmatprep.mubr.f32.mxu0 0.0
    %230 = vmatmul.mubr.f32.gmra.mrb[0].mxu0 %v136
    %v231 = vpop.f32.mrb[0].mxu0
    %v232 = vadd.f32 %v123, %v231
    %v233 = vpop.f32.mrb[0].mxu0
    %234 = vmatprep.mubr.f32.mxu0 0.0
    %235 = vmatmul.mubr.f32.gmra.mrb[0].mxu0 %v139
    %v236 = vpop.f32.mrb[0].mxu0
    %v237 = vadd.f32 %v123, %v236
    %v238 = vpop.f32.mrb[0].mxu0
    %239 = vmatprep.mubr.f32.mxu0 0.0
    %240 = vmatmul.mubr.f32.gmra.mrb[0].mxu0 %v142
    %v241 = vpop.f32.mrb[0].mxu0
    %v242 = vadd.f32 %v123, %v241
    %v243 = vpop.f32.mrb[0].mxu0
    %244 = vmatprep.mubr.f32.mxu0 0.0
    %245 = vmatmul.mubr.f32.gmra.mrb[0].mxu0 %v145
    %v246 = vpop.f32.mrb[0].mxu0
    %v247 = vadd.f32 %v123, %v246
    %v248 = vpop.f32.mrb[0].mxu0
    %249 = vmatprep.mubr.f32.mxu0 0.0
    %250 = vmatmul.mubr.f32.gmra.mrb[0].mxu0 %v148
    %v251 = vpop.f32.mrb[0].mxu0
    %v252 = vadd.f32 %v123, %v251
    %v253 = vpop.f32.mrb[0].mxu0
    %254 = vdwg.mxu0
    %vm255 = vcmask 261120
    %256 = vst.msk [vmem:[#allocation2] sm:$0xff] %vm255, %v217
    %257 = vst.msk [vmem:[#allocation2 + $0x8] sm:$0xff] %vm255, %v222
    %258 = vst.msk [vmem:[#allocation2 + $0x10] sm:$0xff] %vm255, %v227
    %259 = vst.msk [vmem:[#allocation2 + $0x18] sm:$0xff] %vm255, %v232
    %260 = vst.msk [vmem:[#allocation2 + $0x20] sm:$0xff] %vm255, %v237
    %261 = vst.msk [vmem:[#allocation2 + $0x28] sm:$0xff] %vm255, %v242
    %262 = vst.msk [vmem:[#allocation2 + $0x30] sm:$0xff] %vm255, %v247
    %263 = vst.msk [vmem:[#allocation2 + $0x38] sm:$0xff] %vm255, %v252
    %v264 = vld [vmem:[#allocation6] sm:$0xff]
    %v265 = vld [vmem:[#allocation3] sm:$0xff]
    %v266 = vld [vmem:[#allocation2] sm:$0xff]
    %v268 = vsel %vm255, %v265, 0
    %270 = vmatprep.subr.mxu0 0.0
    %271 = vmatpush1.msra.mxu0 %v92
    %272 = vmatprep.subr.mxu0 0.0
    %273 = vmatpush1.msra.mxu0 %v93
    %274 = vmatprep.subr.mxu0 0.0
    %275 = vmatpush1.msra.mxu0 %v94
    %276 = vmatprep.subr.mxu0 0.0
    %277 = vmatpush1.msra.mxu0 %v95
    %278 = vmatprep.subr.mxu0 0.0
    %279 = vmatpush1.msra.mxu0 0.0
    %280 = vmatprep.subr.mxu0 0.0
    %281 = vmatpush1.msra.mxu0 0.0
    %282 = vmatprep.subr.mxu0 0.0
    %283 = vmatpush1.msra.mxu0 0.0
    %284 = vmatprep.subr.mxu0 0.0
    %285 = vmatpush1.msra.mxu0 0.0
    %286 = vmatprep.subr.mxu0 0.0
    %287 = vmatpush1.msra.mxu0 0.0
    %288 = vmatprep.subr.mxu0 0.0
    %289 = vmatpush1.msra.mxu0 0.0
    %290 = vmatprep.subr.mxu0 0.0
    %291 = vmatpush1.msra.mxu0 0.0
    %292 = vmatprep.subr.mxu0 0.0
    %293 = vmatpush1.msra.mxu0 0.0
    %294 = vmatprep.subr.mxu0 0.0
    %295 = vmatpush1.msra.mxu0 0.0
    %296 = vmatprep.subr.mxu0 0.0
    %297 = vmatpush1.msra.mxu0 0.0
    %298 = vmatprep.subr.mxu0 0.0
    %299 = vmatpush1.msra.mxu0 0.0
    %300 = vmatprep.subr.mxu0 0.0
    %301 = vmatpush1.msra.mxu0 0.0
    %302 = vmatprep.subr.mxu0 0.0
    %303 = vmatpush1.msra.mxu0 0.0
    %304 = vmatprep.subr.mxu0 0.0
    %305 = vmatpush1.msra.mxu0 0.0
    %306 = vmatprep.subr.mxu0 0.0
    %307 = vmatpush1.msra.mxu0 0.0
    %308 = vmatprep.subr.mxu0 0.0
    %309 = vmatpush1.msra.mxu0 0.0
    %310 = vmatprep.subr.mxu0 0.0
    %311 = vmatpush1.msra.mxu0 0.0
    %312 = vmatprep.subr.mxu0 0.0
    %313 = vmatpush1.msra.mxu0 0.0
    %314 = vmatprep.subr.mxu0 0.0
    %315 = vmatpush1.msra.mxu0 0.0
    %316 = vmatprep.subr.mxu0 0.0
    %317 = vmatpush1.msra.mxu0 0.0
    %318 = vmatprep.subr.mxu0 0.0
    %319 = vmatpush1.msra.mxu0 0.0
    %320 = vmatprep.subr.mxu0 0.0
    %321 = vmatpush1.msra.mxu0 0.0
    %322 = vmatprep.subr.mxu0 0.0
    %323 = vmatpush1.msra.mxu0 0.0
    %324 = vmatprep.subr.mxu0 0.0
    %325 = vmatpush1.msra.mxu0 0.0
    %326 = vmatprep.subr.mxu0 0.0
    %327 = vmatpush1.msra.mxu0 0.0
    %328 = vmatprep.subr.mxu0 0.0
    %329 = vmatpush1.msra.mxu0 0.0
    %330 = vmatprep.subr.mxu0 0.0
    %331 = vmatpush1.msra.mxu0 0.0
    %332 = vmatprep.subr.mxu0 0.0
    %333 = vmatpush1.msra.mxu0 0.0
    %334 = vmatprep.mubr.f32.mxu0 0.0
    %335 = vmatmul.mubr.f32.gmra.mrb[0].mxu0 %v268
    %v336 = vpop.f32.mrb[0].mxu0
    %v337 = vadd.f32 0.0, %v336
    %v338 = vpop.f32.mrb[0].mxu0
    %339 = vdwg.mxu0
    %v340 = vadd.f32 %v266, %v337
    %v341 = vtanh.pop %v340
    %v342 = vld [vmem:[#allocation2 + $0x8] sm:$0xff]
    %v344 = vsel %vm255, %v341, 0
    %346 = vmatprep.subr.mxu0 0.0
    %347 = vmatpush1.msra.mxu0 %v92
    %348 = vmatprep.subr.mxu0 0.0
    %349 = vmatpush1.msra.mxu0 %v93
    %350 = vmatprep.subr.mxu0 0.0
    %351 = vmatpush1.msra.mxu0 %v94
    %352 = vmatprep.subr.mxu0 0.0
    %353 = vmatpush1.msra.mxu0 %v95
    %354 = vmatprep.subr.mxu0 0.0
    %355 = vmatpush1.msra.mxu0 0.0
    %356 = vmatprep.subr.mxu0 0.0
    %357 = vmatpush1.msra.mxu0 0.0
    %358 = vmatprep.subr.mxu0 0.0
    %359 = vmatpush1.msra.mxu0 0.0
    %360 = vmatprep.subr.mxu0 0.0
    %361 = vmatpush1.msra.mxu0 0.0
    %362 = vmatprep.subr.mxu0 0.0
    %363 = vmatpush1.msra.mxu0 0.0
    %364 = vmatprep.subr.mxu0 0.0
    %365 = vmatpush1.msra.mxu0 0.0
    %366 = vmatprep.subr.mxu0 0.0
    %367 = vmatpush1.msra.mxu0 0.0
    %368 = vmatprep.subr.mxu0 0.0
    %369 = vmatpush1.msra.mxu0 0.0
    %370 = vmatprep.subr.mxu0 0.0
    %371 = vmatpush1.msra.mxu0 0.0
    %372 = vmatprep.subr.mxu0 0.0
    %373 = vmatpush1.msra.mxu0 0.0
    %374 = vmatprep.subr.mxu0 0.0
    %375 = vmatpush1.msra.mxu0 0.0
    %376 = vmatprep.subr.mxu0 0.0
    %377 = vmatpush1.msra.mxu0 0.0
    %378 = vmatprep.subr.mxu0 0.0
    %379 = vmatpush1.msra.mxu0 0.0
    %380 = vmatprep.subr.mxu0 0.0
    %381 = vmatpush1.msra.mxu0 0.0
    %382 = vmatprep.subr.mxu0 0.0
    %383 = vmatpush1.msra.mxu0 0.0
    %384 = vmatprep.subr.mxu0 0.0
    %385 = vmatpush1.msra.mxu0 0.0
    %386 = vmatprep.subr.mxu0 0.0
    %387 = vmatpush1.msra.mxu0 0.0
    %388 = vmatprep.subr.mxu0 0.0
    %389 = vmatpush1.msra.mxu0 0.0
    %390 = vmatprep.subr.mxu0 0.0
    %391 = vmatpush1.msra.mxu0 0.0
    %392 = vmatprep.subr.mxu0 0.0
    %393 = vmatpush1.msra.mxu0 0.0
    %394 = vmatprep.subr.mxu0 0.0
    %395 = vmatpush1.msra.mxu0 0.0
    %396 = vmatprep.subr.mxu0 0.0
    %397 = vmatpush1.msra.mxu0 0.0
    %398 = vmatprep.subr.mxu0 0.0
    %399 = vmatpush1.msra.mxu0 0.0
    %400 = vmatprep.subr.mxu0 0.0
    %401 = vmatpush1.msra.mxu0 0.0
    %402 = vmatprep.subr.mxu0 0.0
    %403 = vmatpush1.msra.mxu0 0.0
    %404 = vmatprep.subr.mxu0 0.0
    %405 = vmatpush1.msra.mxu0 0.0
    %406 = vmatprep.subr.mxu0 0.0
    %407 = vmatpush1.msra.mxu0 0.0
    %408 = vmatprep.subr.mxu0 0.0
    %409 = vmatpush1.msra.mxu0 0.0
    %410 = vmatprep.mubr.f32.mxu0 0.0
    %411 = vmatmul.mubr.f32.gmra.mrb[0].mxu0 %v344
    %v412 = vpop.f32.mrb[0].mxu0
    %v413 = vadd.f32 0.0, %v412
    %v414 = vpop.f32.mrb[0].mxu0
    %415 = vdwg.mxu0
    %v416 = vadd.f32 %v342, %v413
    %v417 = vtanh.pop %v416
    %v419 = vlaneseq
    %v420 = vshrl.u32 %v419, 7
    %v421 = vsub.s32 0, %v420
    %v422 = vrot.slane %v105, %v421
    %424 = vmatprep.subr.mxu0 0.0
    %425 = vmatpush1.msra.mxu0 %v97
    %426 = vmatprep.subr.mxu0 0.0
    %427 = vmatpush1.msra.mxu0 %v98
    %428 = vmatprep.subr.mxu0 0.0
    %429 = vmatpush1.msra.mxu0 %v99
    %430 = vmatprep.subr.mxu0 0.0
    %431 = vmatpush1.msra.mxu0 %v100
    %432 = vmatprep.subr.mxu0 0.0
    %433 = vmatpush1.msra.mxu0 0.0
    %434 = vmatprep.subr.mxu0 0.0
    %435 = vmatpush1.msra.mxu0 0.0
    %436 = vmatprep.subr.mxu0 0.0
    %437 = vmatpush1.msra.mxu0 0.0
    %438 = vmatprep.subr.mxu0 0.0
    %439 = vmatpush1.msra.mxu0 0.0
    %440 = vmatprep.subr.mxu0 0.0
    %441 = vmatpush1.msra.mxu0 0.0
    %442 = vmatprep.subr.mxu0 0.0
    %443 = vmatpush1.msra.mxu0 0.0
    %444 = vmatprep.subr.mxu0 0.0
    %445 = vmatpush1.msra.mxu0 0.0
    %446 = vmatprep.subr.mxu0 0.0
    %447 = vmatpush1.msra.mxu0 0.0
    %448 = vmatprep.subr.mxu0 0.0
    %449 = vmatpush1.msra.mxu0 0.0
    %450 = vmatprep.subr.mxu0 0.0
    %451 = vmatpush1.msra.mxu0 0.0
    %452 = vmatprep.subr.mxu0 0.0
    %453 = vmatpush1.msra.mxu0 0.0
    %454 = vmatprep.subr.mxu0 0.0
    %455 = vmatpush1.msra.mxu0 0.0
    %456 = vmatprep.subr.mxu0 0.0
    %457 = vmatpush1.msra.mxu0 0.0
    %458 = vmatprep.subr.mxu0 0.0
    %459 = vmatpush1.msra.mxu0 0.0
    %460 = vmatprep.subr.mxu0 0.0
    %461 = vmatpush1.msra.mxu0 0.0
    %462 = vmatprep.subr.mxu0 0.0
    %463 = vmatpush1.msra.mxu0 0.0
    %464 = vmatprep.subr.mxu0 0.0
    %465 = vmatpush1.msra.mxu0 0.0
    %466 = vmatprep.subr.mxu0 0.0
    %467 = vmatpush1.msra.mxu0 0.0
    %468 = vmatprep.subr.mxu0 0.0
    %469 = vmatpush1.msra.mxu0 0.0
    %470 = vmatprep.subr.mxu0 0.0
    %471 = vmatpush1.msra.mxu0 0.0
    %472 = vmatprep.subr.mxu0 0.0
    %473 = vmatpush1.msra.mxu0 0.0
    %474 = vmatprep.subr.mxu0 0.0
    %475 = vmatpush1.msra.mxu0 0.0
    %476 = vmatprep.subr.mxu0 0.0
    %477 = vmatpush1.msra.mxu0 0.0
    %478 = vmatprep.subr.mxu0 0.0
    %479 = vmatpush1.msra.mxu0 0.0
    %480 = vmatprep.subr.mxu0 0.0
    %481 = vmatpush1.msra.mxu0 0.0
    %482 = vmatprep.subr.mxu0 0.0
    %483 = vmatpush1.msra.mxu0 0.0
    %484 = vmatprep.subr.mxu0 0.0
    %485 = vmatpush1.msra.mxu0 0.0
    %486 = vmatprep.subr.mxu0 0.0
    %487 = vmatpush1.msra.mxu0 0.0
    %488 = vmatprep.mubr.f32.mxu0 0.0
    %489 = vmatmul.mubr.f32.gmra.mrb[0].mxu0 %v344
    %v490 = vpop.f32.mrb[0].mxu0
    %v491 = vadd.f32 %v422, %v490
    %v492 = vpop.f32.mrb[0].mxu0
    %493 = vdwg.mxu0
    %v495 = vsel %vm255, %v264, 0
    %497 = vmatprep.subr.mxu0 0.0
    %498 = vmatpush1.msra.mxu0 %v101
    %499 = vmatprep.subr.mxu0 0.0
    %500 = vmatpush1.msra.mxu0 %v102
    %501 = vmatprep.subr.mxu0 0.0
    %502 = vmatpush1.msra.mxu0 %v103
    %503 = vmatprep.subr.mxu0 0.0
    %504 = vmatpush1.msra.mxu0 %v104
    %505 = vmatprep.subr.mxu0 0.0
    %506 = vmatpush1.msra.mxu0 0.0
    %507 = vmatprep.subr.mxu0 0.0
    %508 = vmatpush1.msra.mxu0 0.0
    %509 = vmatprep.subr.mxu0 0.0
    %510 = vmatpush1.msra.mxu0 0.0
    %511 = vmatprep.subr.mxu0 0.0
    %512 = vmatpush1.msra.mxu0 0.0
    %513 = vmatprep.subr.mxu0 0.0
    %514 = vmatpush1.msra.mxu0 0.0
    %515 = vmatprep.subr.mxu0 0.0
    %516 = vmatpush1.msra.mxu0 0.0
    %517 = vmatprep.subr.mxu0 0.0
    %518 = vmatpush1.msra.mxu0 0.0
    %519 = vmatprep.subr.mxu0 0.0
    %520 = vmatpush1.msra.mxu0 0.0
    %521 = vmatprep.subr.mxu0 0.0
    %522 = vmatpush1.msra.mxu0 0.0
    %523 = vmatprep.subr.mxu0 0.0
    %524 = vmatpush1.msra.mxu0 0.0
    %525 = vmatprep.subr.mxu0 0.0
    %526 = vmatpush1.msra.mxu0 0.0
    %527 = vmatprep.subr.mxu0 0.0
    %528 = vmatpush1.msra.mxu0 0.0
    %529 = vmatprep.subr.mxu0 0.0
    %530 = vmatpush1.msra.mxu0 0.0
    %531 = vmatprep.subr.mxu0 0.0
    %532 = vmatpush1.msra.mxu0 0.0
    %533 = vmatprep.subr.mxu0 0.0
    %534 = vmatpush1.msra.mxu0 0.0
    %535 = vmatprep.subr.mxu0 0.0
    %536 = vmatpush1.msra.mxu0 0.0
    %537 = vmatprep.subr.mxu0 0.0
    %538 = vmatpush1.msra.mxu0 0.0
    %539 = vmatprep.subr.mxu0 0.0
    %540 = vmatpush1.msra.mxu0 0.0
    %541 = vmatprep.subr.mxu0 0.0
    %542 = vmatpush1.msra.mxu0 0.0
    %543 = vmatprep.subr.mxu0 0.0
    %544 = vmatpush1.msra.mxu0 0.0
    %545 = vmatprep.subr.mxu0 0.0
    %546 = vmatpush1.msra.mxu0 0.0
    %547 = vmatprep.subr.mxu0 0.0
    %548 = vmatpush1.msra.mxu0 0.0
    %549 = vmatprep.subr.mxu0 0.0
    %550 = vmatpush1.msra.mxu0 0.0
    %551 = vmatprep.subr.mxu0 0.0
    %552 = vmatpush1.msra.mxu0 0.0
    %553 = vmatprep.subr.mxu0 0.0
    %554 = vmatpush1.msra.mxu0 0.0
    %555 = vmatprep.subr.mxu0 0.0
    %556 = vmatpush1.msra.mxu0 0.0
    %557 = vmatprep.subr.mxu0 0.0
    %558 = vmatpush1.msra.mxu0 0.0
    %559 = vmatprep.subr.mxu0 0.0
    %560 = vmatpush1.msra.mxu0 0.0
    %561 = vmatprep.mubr.f32.mxu0 0.0
    %562 = vmatmul.mubr.f32.gmra.mrb[0].mxu0 %v495
    %v563 = vpop.f32.mrb[0].mxu0
    %v564 = vadd.f32 0.0, %v563
    %v565 = vpop.f32.mrb[0].mxu0
    %566 = vdwg.mxu0
    %v567 = vadd.f32 %v491, %v564
    %v568 = vtanh.pop %v567
    %569 = vst.msk [vmem:[#allocation2] sm:$0xff] %vm255, %v568
    %v570 = vld [vmem:[#allocation2 + $0x10] sm:$0xff]
    %v572 = vsel %vm255, %v417, 0
    %574 = vmatprep.subr.mxu0 0.0
    %575 = vmatpush1.msra.mxu0 %v92
    %576 = vmatprep.subr.mxu0 0.0
    %577 = vmatpush1.msra.mxu0 %v93
    %578 = vmatprep.subr.mxu0 0.0
    %579 = vmatpush1.msra.mxu0 %v94
    %580 = vmatprep.subr.mxu0 0.0
    %581 = vmatpush1.msra.mxu0 %v95
    %582 = vmatprep.subr.mxu0 0.0
    %583 = vmatpush1.msra.mxu0 0.0
    %584 = vmatprep.subr.mxu0 0.0
    %585 = vmatpush1.msra.mxu0 0.0
    %586 = vmatprep.subr.mxu0 0.0
    %587 = vmatpush1.msra.mxu0 0.0
    %588 = vmatprep.subr.mxu0 0.0
    %589 = vmatpush1.msra.mxu0 0.0
    %590 = vmatprep.subr.mxu0 0.0
    %591 = vmatpush1.msra.mxu0 0.0
    %592 = vmatprep.subr.mxu0 0.0
    %593 = vmatpush1.msra.mxu0 0.0
    %594 = vmatprep.subr.mxu0 0.0
    %595 = vmatpush1.msra.mxu0 0.0
    %596 = vmatprep.subr.mxu0 0.0
    %597 = vmatpush1.msra.mxu0 0.0
    %598 = vmatprep.subr.mxu0 0.0
    %599 = vmatpush1.msra.mxu0 0.0
    %600 = vmatprep.subr.mxu0 0.0
    %601 = vmatpush1.msra.mxu0 0.0
    %602 = vmatprep.subr.mxu0 0.0
    %603 = vmatpush1.msra.mxu0 0.0
    %604 = vmatprep.subr.mxu0 0.0
    %605 = vmatpush1.msra.mxu0 0.0
    %606 = vmatprep.subr.mxu0 0.0
    %607 = vmatpush1.msra.mxu0 0.0
    %608 = vmatprep.subr.mxu0 0.0
    %609 = vmatpush1.msra.mxu0 0.0
    %610 = vmatprep.subr.mxu0 0.0
    %611 = vmatpush1.msra.mxu0 0.0
    %612 = vmatprep.subr.mxu0 0.0
    %613 = vmatpush1.msra.mxu0 0.0
    %614 = vmatprep.subr.mxu0 0.0
    %615 = vmatpush1.msra.mxu0 0.0
    %616 = vmatprep.subr.mxu0 0.0
    %617 = vmatpush1.msra.mxu0 0.0
    %618 = vmatprep.subr.mxu0 0.0
    %619 = vmatpush1.msra.mxu0 0.0
    %620 = vmatprep.subr.mxu0 0.0
    %621 = vmatpush1.msra.mxu0 0.0
    %622 = vmatprep.subr.mxu0 0.0
    %623 = vmatpush1.msra.mxu0 0.0
    %624 = vmatprep.subr.mxu0 0.0
    %625 = vmatpush1.msra.mxu0 0.0
    %626 = vmatprep.subr.mxu0 0.0
    %627 = vmatpush1.msra.mxu0 0.0
    %628 = vmatprep.subr.mxu0 0.0
    %629 = vmatpush1.msra.mxu0 0.0
    %630 = vmatprep.subr.mxu0 0.0
    %631 = vmatpush1.msra.mxu0 0.0
    %632 = vmatprep.subr.mxu0 0.0
    %633 = vmatpush1.msra.mxu0 0.0
    %634 = vmatprep.subr.mxu0 0.0
    %635 = vmatpush1.msra.mxu0 0.0
    %636 = vmatprep.subr.mxu0 0.0
    %637 = vmatpush1.msra.mxu0 0.0
    %638 = vmatprep.mubr.f32.mxu0 0.0
    %639 = vmatmul.mubr.f32.gmra.mrb[0].mxu0 %v572
    %v640 = vpop.f32.mrb[0].mxu0
    %v641 = vadd.f32 0.0, %v640
    %v642 = vpop.f32.mrb[0].mxu0
    %643 = vdwg.mxu0
    %v644 = vadd.f32 %v570, %v641
    %v645 = vtanh.pop %v644
    %646 = vmatprep.subr.mxu0 0.0
    %647 = vmatpush1.msra.mxu0 %v97
    %648 = vmatprep.subr.mxu0 0.0
    %649 = vmatpush1.msra.mxu0 %v98
    %650 = vmatprep.subr.mxu0 0.0
    %651 = vmatpush1.msra.mxu0 %v99
    %652 = vmatprep.subr.mxu0 0.0
    %653 = vmatpush1.msra.mxu0 %v100
    %654 = vmatprep.subr.mxu0 0.0
    %655 = vmatpush1.msra.mxu0 0.0
    %656 = vmatprep.subr.mxu0 0.0
    %657 = vmatpush1.msra.mxu0 0.0
    %658 = vmatprep.subr.mxu0 0.0
    %659 = vmatpush1.msra.mxu0 0.0
    %660 = vmatprep.subr.mxu0 0.0
    %661 = vmatpush1.msra.mxu0 0.0
    %662 = vmatprep.subr.mxu0 0.0
    %663 = vmatpush1.msra.mxu0 0.0
    %664 = vmatprep.subr.mxu0 0.0
    %665 = vmatpush1.msra.mxu0 0.0
    %666 = vmatprep.subr.mxu0 0.0
    %667 = vmatpush1.msra.mxu0 0.0
    %668 = vmatprep.subr.mxu0 0.0
    %669 = vmatpush1.msra.mxu0 0.0
    %670 = vmatprep.subr.mxu0 0.0
    %671 = vmatpush1.msra.mxu0 0.0
    %672 = vmatprep.subr.mxu0 0.0
    %673 = vmatpush1.msra.mxu0 0.0
    %674 = vmatprep.subr.mxu0 0.0
    %675 = vmatpush1.msra.mxu0 0.0
    %676 = vmatprep.subr.mxu0 0.0
    %677 = vmatpush1.msra.mxu0 0.0
    %678 = vmatprep.subr.mxu0 0.0
    %679 = vmatpush1.msra.mxu0 0.0
    %680 = vmatprep.subr.mxu0 0.0
    %681 = vmatpush1.msra.mxu0 0.0
    %682 = vmatprep.subr.mxu0 0.0
    %683 = vmatpush1.msra.mxu0 0.0
    %684 = vmatprep.subr.mxu0 0.0
    %685 = vmatpush1.msra.mxu0 0.0
    %686 = vmatprep.subr.mxu0 0.0
    %687 = vmatpush1.msra.mxu0 0.0
    %688 = vmatprep.subr.mxu0 0.0
    %689 = vmatpush1.msra.mxu0 0.0
    %690 = vmatprep.subr.mxu0 0.0
    %691 = vmatpush1.msra.mxu0 0.0
    %692 = vmatprep.subr.mxu0 0.0
    %693 = vmatpush1.msra.mxu0 0.0
    %694 = vmatprep.subr.mxu0 0.0
    %695 = vmatpush1.msra.mxu0 0.0
    %696 = vmatprep.subr.mxu0 0.0
    %697 = vmatpush1.msra.mxu0 0.0
    %698 = vmatprep.subr.mxu0 0.0
    %699 = vmatpush1.msra.mxu0 0.0
    %700 = vmatprep.subr.mxu0 0.0
    %701 = vmatpush1.msra.mxu0 0.0
    %702 = vmatprep.subr.mxu0 0.0
    %703 = vmatpush1.msra.mxu0 0.0
    %704 = vmatprep.subr.mxu0 0.0
    %705 = vmatpush1.msra.mxu0 0.0
    %706 = vmatprep.subr.mxu0 0.0
    %707 = vmatpush1.msra.mxu0 0.0
    %708 = vmatprep.subr.mxu0 0.0
    %709 = vmatpush1.msra.mxu0 0.0
    %710 = vmatprep.mubr.f32.mxu0 0.0
    %711 = vmatmul.mubr.f32.gmra.mrb[0].mxu0 %v572
    %v712 = vpop.f32.mrb[0].mxu0
    %v713 = vadd.f32 %v422, %v712
    %v714 = vpop.f32.mrb[0].mxu0
    %715 = vdwg.mxu0
    %v717 = vsel %vm255, %v568, 0
    %719 = vmatprep.subr.mxu0 0.0
    %720 = vmatpush1.msra.mxu0 %v101
    %721 = vmatprep.subr.mxu0 0.0
    %722 = vmatpush1.msra.mxu0 %v102
    %723 = vmatprep.subr.mxu0 0.0
    %724 = vmatpush1.msra.mxu0 %v103
    %725 = vmatprep.subr.mxu0 0.0
    %726 = vmatpush1.msra.mxu0 %v104
    %727 = vmatprep.subr.mxu0 0.0
    %728 = vmatpush1.msra.mxu0 0.0
    %729 = vmatprep.subr.mxu0 0.0
    %730 = vmatpush1.msra.mxu0 0.0
    %731 = vmatprep.subr.mxu0 0.0
    %732 = vmatpush1.msra.mxu0 0.0
    %733 = vmatprep.subr.mxu0 0.0
    %734 = vmatpush1.msra.mxu0 0.0
    %735 = vmatprep.subr.mxu0 0.0
    %736 = vmatpush1.msra.mxu0 0.0
    %737 = vmatprep.subr.mxu0 0.0
    %738 = vmatpush1.msra.mxu0 0.0
    %739 = vmatprep.subr.mxu0 0.0
    %740 = vmatpush1.msra.mxu0 0.0
    %741 = vmatprep.subr.mxu0 0.0
    %742 = vmatpush1.msra.mxu0 0.0
    %743 = vmatprep.subr.mxu0 0.0
    %744 = vmatpush1.msra.mxu0 0.0
    %745 = vmatprep.subr.mxu0 0.0
    %746 = vmatpush1.msra.mxu0 0.0
    %747 = vmatprep.subr.mxu0 0.0
    %748 = vmatpush1.msra.mxu0 0.0
    %749 = vmatprep.subr.mxu0 0.0
    %750 = vmatpush1.msra.mxu0 0.0
    %751 = vmatprep.subr.mxu0 0.0
    %752 = vmatpush1.msra.mxu0 0.0
    %753 = vmatprep.subr.mxu0 0.0
    %754 = vmatpush1.msra.mxu0 0.0
    %755 = vmatprep.subr.mxu0 0.0
    %756 = vmatpush1.msra.mxu0 0.0
    %757 = vmatprep.subr.mxu0 0.0
    %758 = vmatpush1.msra.mxu0 0.0
    %759 = vmatprep.subr.mxu0 0.0
    %760 = vmatpush1.msra.mxu0 0.0
    %761 = vmatprep.subr.mxu0 0.0
    %762 = vmatpush1.msra.mxu0 0.0
    %763 = vmatprep.subr.mxu0 0.0
    %764 = vmatpush1.msra.mxu0 0.0
    %765 = vmatprep.subr.mxu0 0.0
    %766 = vmatpush1.msra.mxu0 0.0
    %767 = vmatprep.subr.mxu0 0.0
    %768 = vmatpush1.msra.mxu0 0.0
    %769 = vmatprep.subr.mxu0 0.0
    %770 = vmatpush1.msra.mxu0 0.0
    %771 = vmatprep.subr.mxu0 0.0
    %772 = vmatpush1.msra.mxu0 0.0
    %773 = vmatprep.subr.mxu0 0.0
    %774 = vmatpush1.msra.mxu0 0.0
    %775 = vmatprep.subr.mxu0 0.0
    %776 = vmatpush1.msra.mxu0 0.0
    %777 = vmatprep.subr.mxu0 0.0
    %778 = vmatpush1.msra.mxu0 0.0
    %779 = vmatprep.subr.mxu0 0.0
    %780 = vmatpush1.msra.mxu0 0.0
    %781 = vmatprep.subr.mxu0 0.0
    %782 = vmatpush1.msra.mxu0 0.0
    %783 = vmatprep.mubr.f32.mxu0 0.0
    %784 = vmatmul.mubr.f32.gmra.mrb[0].mxu0 %v717
    %v785 = vpop.f32.mrb[0].mxu0
    %v786 = vadd.f32 0.0, %v785
    %v787 = vpop.f32.mrb[0].mxu0
    %788 = vdwg.mxu0
    %v789 = vadd.f32 %v713, %v786
    %v790 = vtanh.pop %v789
    %791 = vst.msk [vmem:[#allocation2 + $0x8] sm:$0xff] %vm255, %v790
    %v792 = vld [vmem:[#allocation2 + $0x18] sm:$0xff]
    %v794 = vsel %vm255, %v645, 0
    %796 = vmatprep.subr.mxu0 0.0
    %797 = vmatpush1.msra.mxu0 %v92
    %798 = vmatprep.subr.mxu0 0.0
    %799 = vmatpush1.msra.mxu0 %v93
    %800 = vmatprep.subr.mxu0 0.0
    %801 = vmatpush1.msra.mxu0 %v94
    %802 = vmatprep.subr.mxu0 0.0
    %803 = vmatpush1.msra.mxu0 %v95
    %804 = vmatprep.subr.mxu0 0.0
    %805 = vmatpush1.msra.mxu0 0.0
    %806 = vmatprep.subr.mxu0 0.0
    %807 = vmatpush1.msra.mxu0 0.0
    %808 = vmatprep.subr.mxu0 0.0
    %809 = vmatpush1.msra.mxu0 0.0
    %810 = vmatprep.subr.mxu0 0.0
    %811 = vmatpush1.msra.mxu0 0.0
    %812 = vmatprep.subr.mxu0 0.0
    %813 = vmatpush1.msra.mxu0 0.0
    %814 = vmatprep.subr.mxu0 0.0
    %815 = vmatpush1.msra.mxu0 0.0
    %816 = vmatprep.subr.mxu0 0.0
    %817 = vmatpush1.msra.mxu0 0.0
    %818 = vmatprep.subr.mxu0 0.0
    %819 = vmatpush1.msra.mxu0 0.0
    %820 = vmatprep.subr.mxu0 0.0
    %821 = vmatpush1.msra.mxu0 0.0
    %822 = vmatprep.subr.mxu0 0.0
    %823 = vmatpush1.msra.mxu0 0.0
    %824 = vmatprep.subr.mxu0 0.0
    %825 = vmatpush1.msra.mxu0 0.0
    %826 = vmatprep.subr.mxu0 0.0
    %827 = vmatpush1.msra.mxu0 0.0
    %828 = vmatprep.subr.mxu0 0.0
    %829 = vmatpush1.msra.mxu0 0.0
    %830 = vmatprep.subr.mxu0 0.0
    %831 = vmatpush1.msra.mxu0 0.0
    %832 = vmatprep.subr.mxu0 0.0
    %833 = vmatpush1.msra.mxu0 0.0
    %834 = vmatprep.subr.mxu0 0.0
    %835 = vmatpush1.msra.mxu0 0.0
    %836 = vmatprep.subr.mxu0 0.0
    %837 = vmatpush1.msra.mxu0 0.0
    %838 = vmatprep.subr.mxu0 0.0
    %839 = vmatpush1.msra.mxu0 0.0
    %840 = vmatprep.subr.mxu0 0.0
    %841 = vmatpush1.msra.mxu0 0.0
    %842 = vmatprep.subr.mxu0 0.0
    %843 = vmatpush1.msra.mxu0 0.0
    %844 = vmatprep.subr.mxu0 0.0
    %845 = vmatpush1.msra.mxu0 0.0
    %846 = vmatprep.subr.mxu0 0.0
    %847 = vmatpush1.msra.mxu0 0.0
    %848 = vmatprep.subr.mxu0 0.0
    %849 = vmatpush1.msra.mxu0 0.0
    %850 = vmatprep.subr.mxu0 0.0
    %851 = vmatpush1.msra.mxu0 0.0
    %852 = vmatprep.subr.mxu0 0.0
    %853 = vmatpush1.msra.mxu0 0.0
    %854 = vmatprep.subr.mxu0 0.0
    %855 = vmatpush1.msra.mxu0 0.0
    %856 = vmatprep.subr.mxu0 0.0
    %857 = vmatpush1.msra.mxu0 0.0
    %858 = vmatprep.subr.mxu0 0.0
    %859 = vmatpush1.msra.mxu0 0.0
    %860 = vmatprep.mubr.f32.mxu0 0.0
    %861 = vmatmul.mubr.f32.gmra.mrb[0].mxu0 %v794
    %v862 = vpop.f32.mrb[0].mxu0
    %v863 = vadd.f32 0.0, %v862
    %v864 = vpop.f32.mrb[0].mxu0
    %865 = vdwg.mxu0
    %v866 = vadd.f32 %v792, %v863
    %v867 = vtanh.pop %v866
    %868 = vmatprep.subr.mxu0 0.0
    %869 = vmatpush1.msra.mxu0 %v97
    %870 = vmatprep.subr.mxu0 0.0
    %871 = vmatpush1.msra.mxu0 %v98
    %872 = vmatprep.subr.mxu0 0.0
    %873 = vmatpush1.msra.mxu0 %v99
    %874 = vmatprep.subr.mxu0 0.0
    %875 = vmatpush1.msra.mxu0 %v100
    %876 = vmatprep.subr.mxu0 0.0
    %877 = vmatpush1.msra.mxu0 0.0
    %878 = vmatprep.subr.mxu0 0.0
    %879 = vmatpush1.msra.mxu0 0.0
    %880 = vmatprep.subr.mxu0 0.0
    %881 = vmatpush1.msra.mxu0 0.0
    %882 = vmatprep.subr.mxu0 0.0
    %883 = vmatpush1.msra.mxu0 0.0
    %884 = vmatprep.subr.mxu0 0.0
    %885 = vmatpush1.msra.mxu0 0.0
    %886 = vmatprep.subr.mxu0 0.0
    %887 = vmatpush1.msra.mxu0 0.0
    %888 = vmatprep.subr.mxu0 0.0
    %889 = vmatpush1.msra.mxu0 0.0
    %890 = vmatprep.subr.mxu0 0.0
    %891 = vmatpush1.msra.mxu0 0.0
    %892 = vmatprep.subr.mxu0 0.0
    %893 = vmatpush1.msra.mxu0 0.0
    %894 = vmatprep.subr.mxu0 0.0
    %895 = vmatpush1.msra.mxu0 0.0
    %896 = vmatprep.subr.mxu0 0.0
    %897 = vmatpush1.msra.mxu0 0.0
    %898 = vmatprep.subr.mxu0 0.0
    %899 = vmatpush1.msra.mxu0 0.0
    %900 = vmatprep.subr.mxu0 0.0
    %901 = vmatpush1.msra.mxu0 0.0
    %902 = vmatprep.subr.mxu0 0.0
    %903 = vmatpush1.msra.mxu0 0.0
    %904 = vmatprep.subr.mxu0 0.0
    %905 = vmatpush1.msra.mxu0 0.0
    %906 = vmatprep.subr.mxu0 0.0
    %907 = vmatpush1.msra.mxu0 0.0
    %908 = vmatprep.subr.mxu0 0.0
    %909 = vmatpush1.msra.mxu0 0.0
    %910 = vmatprep.subr.mxu0 0.0
    %911 = vmatpush1.msra.mxu0 0.0
    %912 = vmatprep.subr.mxu0 0.0
    %913 = vmatpush1.msra.mxu0 0.0
    %914 = vmatprep.subr.mxu0 0.0
    %915 = vmatpush1.msra.mxu0 0.0
    %916 = vmatprep.subr.mxu0 0.0
    %917 = vmatpush1.msra.mxu0 0.0
    %918 = vmatprep.subr.mxu0 0.0
    %919 = vmatpush1.msra.mxu0 0.0
    %920 = vmatprep.subr.mxu0 0.0
    %921 = vmatpush1.msra.mxu0 0.0
    %922 = vmatprep.subr.mxu0 0.0
    %923 = vmatpush1.msra.mxu0 0.0
    %924 = vmatprep.subr.mxu0 0.0
    %925 = vmatpush1.msra.mxu0 0.0
    %926 = vmatprep.subr.mxu0 0.0
    %927 = vmatpush1.msra.mxu0 0.0
    %928 = vmatprep.subr.mxu0 0.0
    %929 = vmatpush1.msra.mxu0 0.0
    %930 = vmatprep.subr.mxu0 0.0
    %931 = vmatpush1.msra.mxu0 0.0
    %932 = vmatprep.mubr.f32.mxu0 0.0
    %933 = vmatmul.mubr.f32.gmra.mrb[0].mxu0 %v794
    %v934 = vpop.f32.mrb[0].mxu0
    %v935 = vadd.f32 %v422, %v934
    %v936 = vpop.f32.mrb[0].mxu0
    %937 = vdwg.mxu0
    %v939 = vsel %vm255, %v790, 0
    %941 = vmatprep.subr.mxu0 0.0
    %942 = vmatpush1.msra.mxu0 %v101
    %943 = vmatprep.subr.mxu0 0.0
    %944 = vmatpush1.msra.mxu0 %v102
    %945 = vmatprep.subr.mxu0 0.0
    %946 = vmatpush1.msra.mxu0 %v103
    %947 = vmatprep.subr.mxu0 0.0
    %948 = vmatpush1.msra.mxu0 %v104
    %949 = vmatprep.subr.mxu0 0.0
    %950 = vmatpush1.msra.mxu0 0.0
    %951 = vmatprep.subr.mxu0 0.0
    %952 = vmatpush1.msra.mxu0 0.0
    %953 = vmatprep.subr.mxu0 0.0
    %954 = vmatpush1.msra.mxu0 0.0
    %955 = vmatprep.subr.mxu0 0.0
    %956 = vmatpush1.msra.mxu0 0.0
    %957 = vmatprep.subr.mxu0 0.0
    %958 = vmatpush1.msra.mxu0 0.0
    %959 = vmatprep.subr.mxu0 0.0
    %960 = vmatpush1.msra.mxu0 0.0
    %961 = vmatprep.subr.mxu0 0.0
    %962 = vmatpush1.msra.mxu0 0.0
    %963 = vmatprep.subr.mxu0 0.0
    %964 = vmatpush1.msra.mxu0 0.0
    %965 = vmatprep.subr.mxu0 0.0
    %966 = vmatpush1.msra.mxu0 0.0
    %967 = vmatprep.subr.mxu0 0.0
    %968 = vmatpush1.msra.mxu0 0.0
    %969 = vmatprep.subr.mxu0 0.0
    %970 = vmatpush1.msra.mxu0 0.0
    %971 = vmatprep.subr.mxu0 0.0
    %972 = vmatpush1.msra.mxu0 0.0
    %973 = vmatprep.subr.mxu0 0.0
    %974 = vmatpush1.msra.mxu0 0.0
    %975 = vmatprep.subr.mxu0 0.0
    %976 = vmatpush1.msra.mxu0 0.0
    %977 = vmatprep.subr.mxu0 0.0
    %978 = vmatpush1.msra.mxu0 0.0
    %979 = vmatprep.subr.mxu0 0.0
    %980 = vmatpush1.msra.mxu0 0.0
    %981 = vmatprep.subr.mxu0 0.0
    %982 = vmatpush1.msra.mxu0 0.0
    %983 = vmatprep.subr.mxu0 0.0
    %984 = vmatpush1.msra.mxu0 0.0
    %985 = vmatprep.subr.mxu0 0.0
    %986 = vmatpush1.msra.mxu0 0.0
    %987 = vmatprep.subr.mxu0 0.0
    %988 = vmatpush1.msra.mxu0 0.0
    %989 = vmatprep.subr.mxu0 0.0
    %990 = vmatpush1.msra.mxu0 0.0
    %991 = vmatprep.subr.mxu0 0.0
    %992 = vmatpush1.msra.mxu0 0.0
    %993 = vmatprep.subr.mxu0 0.0
    %994 = vmatpush1.msra.mxu0 0.0
    %995 = vmatprep.subr.mxu0 0.0
    %996 = vmatpush1.msra.mxu0 0.0
    %997 = vmatprep.subr.mxu0 0.0
    %998 = vmatpush1.msra.mxu0 0.0
    %999 = vmatprep.subr.mxu0 0.0
    %1000 = vmatpush1.msra.mxu0 0.0
    %1001 = vmatprep.subr.mxu0 0.0
    %1002 = vmatpush1.msra.mxu0 0.0
    %1003 = vmatprep.subr.mxu0 0.0
    %1004 = vmatpush1.msra.mxu0 0.0
    %1005 = vmatprep.mubr.f32.mxu0 0.0
    %1006 = vmatmul.mubr.f32.gmra.mrb[0].mxu0 %v939
    %v1007 = vpop.f32.mrb[0].mxu0
    %v1008 = vadd.f32 0.0, %v1007
    %v1009 = vpop.f32.mrb[0].mxu0
    %1010 = vdwg.mxu0
    %v1011 = vadd.f32 %v935, %v1008
    %v1012 = vtanh.pop %v1011
    %1013 = vst.msk [vmem:[#allocation2 + $0x10] sm:$0xff] %vm255, %v1012
    %v1014 = vld [vmem:[#allocation2 + $0x20] sm:$0xff]
    %v1016 = vsel %vm255, %v867, 0
    %1018 = vmatprep.subr.mxu0 0.0
    %1019 = vmatpush1.msra.mxu0 %v92
    %1020 = vmatprep.subr.mxu0 0.0
    %1021 = vmatpush1.msra.mxu0 %v93
    %1022 = vmatprep.subr.mxu0 0.0
    %1023 = vmatpush1.msra.mxu0 %v94
    %1024 = vmatprep.subr.mxu0 0.0
    %1025 = vmatpush1.msra.mxu0 %v95
    %1026 = vmatprep.subr.mxu0 0.0
    %1027 = vmatpush1.msra.mxu0 0.0
    %1028 = vmatprep.subr.mxu0 0.0
    %1029 = vmatpush1.msra.mxu0 0.0
    %1030 = vmatprep.subr.mxu0 0.0
    %1031 = vmatpush1.msra.mxu0 0.0
    %1032 = vmatprep.subr.mxu0 0.0
    %1033 = vmatpush1.msra.mxu0 0.0
    %1034 = vmatprep.subr.mxu0 0.0
    %1035 = vmatpush1.msra.mxu0 0.0
    %1036 = vmatprep.subr.mxu0 0.0
    %1037 = vmatpush1.msra.mxu0 0.0
    %1038 = vmatprep.subr.mxu0 0.0
    %1039 = vmatpush1.msra.mxu0 0.0
    %1040 = vmatprep.subr.mxu0 0.0
    %1041 = vmatpush1.msra.mxu0 0.0
    %1042 = vmatprep.subr.mxu0 0.0
    %1043 = vmatpush1.msra.mxu0 0.0
    %1044 = vmatprep.subr.mxu0 0.0
    %1045 = vmatpush1.msra.mxu0 0.0
    %1046 = vmatprep.subr.mxu0 0.0
    %1047 = vmatpush1.msra.mxu0 0.0
    %1048 = vmatprep.subr.mxu0 0.0
    %1049 = vmatpush1.msra.mxu0 0.0
    %1050 = vmatprep.subr.mxu0 0.0
    %1051 = vmatpush1.msra.mxu0 0.0
    %1052 = vmatprep.subr.mxu0 0.0
    %1053 = vmatpush1.msra.mxu0 0.0
    %1054 = vmatprep.subr.mxu0 0.0
    %1055 = vmatpush1.msra.mxu0 0.0
    %1056 = vmatprep.subr.mxu0 0.0
    %1057 = vmatpush1.msra.mxu0 0.0
    %1058 = vmatprep.subr.mxu0 0.0
    %1059 = vmatpush1.msra.mxu0 0.0
    %1060 = vmatprep.subr.mxu0 0.0
    %1061 = vmatpush1.msra.mxu0 0.0
    %1062 = vmatprep.subr.mxu0 0.0
    %1063 = vmatpush1.msra.mxu0 0.0
    %1064 = vmatprep.subr.mxu0 0.0
    %1065 = vmatpush1.msra.mxu0 0.0
    %1066 = vmatprep.subr.mxu0 0.0
    %1067 = vmatpush1.msra.mxu0 0.0
    %1068 = vmatprep.subr.mxu0 0.0
    %1069 = vmatpush1.msra.mxu0 0.0
    %1070 = vmatprep.subr.mxu0 0.0
    %1071 = vmatpush1.msra.mxu0 0.0
    %1072 = vmatprep.subr.mxu0 0.0
    %1073 = vmatpush1.msra.mxu0 0.0
    %1074 = vmatprep.subr.mxu0 0.0
    %1075 = vmatpush1.msra.mxu0 0.0
    %1076 = vmatprep.subr.mxu0 0.0
    %1077 = vmatpush1.msra.mxu0 0.0
    %1078 = vmatprep.subr.mxu0 0.0
    %1079 = vmatpush1.msra.mxu0 0.0
    %1080 = vmatprep.subr.mxu0 0.0
    %1081 = vmatpush1.msra.mxu0 0.0
    %1082 = vmatprep.mubr.f32.mxu0 0.0
    %1083 = vmatmul.mubr.f32.gmra.mrb[0].mxu0 %v1016
    %v1084 = vpop.f32.mrb[0].mxu0
    %v1085 = vadd.f32 0.0, %v1084
    %v1086 = vpop.f32.mrb[0].mxu0
    %1087 = vdwg.mxu0
    %v1088 = vadd.f32 %v1014, %v1085
    %v1089 = vtanh.pop %v1088
    %1090 = vmatprep.subr.mxu0 0.0
    %1091 = vmatpush1.msra.mxu0 %v97
    %1092 = vmatprep.subr.mxu0 0.0
    %1093 = vmatpush1.msra.mxu0 %v98
    %1094 = vmatprep.subr.mxu0 0.0
    %1095 = vmatpush1.msra.mxu0 %v99
    %1096 = vmatprep.subr.mxu0 0.0
    %1097 = vmatpush1.msra.mxu0 %v100
    %1098 = vmatprep.subr.mxu0 0.0
    %1099 = vmatpush1.msra.mxu0 0.0
    %1100 = vmatprep.subr.mxu0 0.0
    %1101 = vmatpush1.msra.mxu0 0.0
    %1102 = vmatprep.subr.mxu0 0.0
    %1103 = vmatpush1.msra.mxu0 0.0
    %1104 = vmatprep.subr.mxu0 0.0
    %1105 = vmatpush1.msra.mxu0 0.0
    %1106 = vmatprep.subr.mxu0 0.0
    %1107 = vmatpush1.msra.mxu0 0.0
    %1108 = vmatprep.subr.mxu0 0.0
    %1109 = vmatpush1.msra.mxu0 0.0
    %1110 = vmatprep.subr.mxu0 0.0
    %1111 = vmatpush1.msra.mxu0 0.0
    %1112 = vmatprep.subr.mxu0 0.0
    %1113 = vmatpush1.msra.mxu0 0.0
    %1114 = vmatprep.subr.mxu0 0.0
    %1115 = vmatpush1.msra.mxu0 0.0
    %1116 = vmatprep.subr.mxu0 0.0
    %1117 = vmatpush1.msra.mxu0 0.0
    %1118 = vmatprep.subr.mxu0 0.0
    %1119 = vmatpush1.msra.mxu0 0.0
    %1120 = vmatprep.subr.mxu0 0.0
    %1121 = vmatpush1.msra.mxu0 0.0
    %1122 = vmatprep.subr.mxu0 0.0
    %1123 = vmatpush1.msra.mxu0 0.0
    %1124 = vmatprep.subr.mxu0 0.0
    %1125 = vmatpush1.msra.mxu0 0.0
    %1126 = vmatprep.subr.mxu0 0.0
    %1127 = vmatpush1.msra.mxu0 0.0
    %1128 = vmatprep.subr.mxu0 0.0
    %1129 = vmatpush1.msra.mxu0 0.0
    %1130 = vmatprep.subr.mxu0 0.0
    %1131 = vmatpush1.msra.mxu0 0.0
    %1132 = vmatprep.subr.mxu0 0.0
    %1133 = vmatpush1.msra.mxu0 0.0
    %1134 = vmatprep.subr.mxu0 0.0
    %1135 = vmatpush1.msra.mxu0 0.0
    %1136 = vmatprep.subr.mxu0 0.0
    %1137 = vmatpush1.msra.mxu0 0.0
    %1138 = vmatprep.subr.mxu0 0.0
    %1139 = vmatpush1.msra.mxu0 0.0
    %1140 = vmatprep.subr.mxu0 0.0
    %1141 = vmatpush1.msra.mxu0 0.0
    %1142 = vmatprep.subr.mxu0 0.0
    %1143 = vmatpush1.msra.mxu0 0.0
    %1144 = vmatprep.subr.mxu0 0.0
    %1145 = vmatpush1.msra.mxu0 0.0
    %1146 = vmatprep.subr.mxu0 0.0
    %1147 = vmatpush1.msra.mxu0 0.0
    %1148 = vmatprep.subr.mxu0 0.0
    %1149 = vmatpush1.msra.mxu0 0.0
    %1150 = vmatprep.subr.mxu0 0.0
    %1151 = vmatpush1.msra.mxu0 0.0
    %1152 = vmatprep.subr.mxu0 0.0
    %1153 = vmatpush1.msra.mxu0 0.0
    %1154 = vmatprep.mubr.f32.mxu0 0.0
    %1155 = vmatmul.mubr.f32.gmra.mrb[0].mxu0 %v1016
    %v1156 = vpop.f32.mrb[0].mxu0
    %v1157 = vadd.f32 %v422, %v1156
    %v1158 = vpop.f32.mrb[0].mxu0
    %1159 = vdwg.mxu0
    %v1161 = vsel %vm255, %v1012, 0
    %1163 = vmatprep.subr.mxu0 0.0
    %1164 = vmatpush1.msra.mxu0 %v101
    %1165 = vmatprep.subr.mxu0 0.0
    %1166 = vmatpush1.msra.mxu0 %v102
    %1167 = vmatprep.subr.mxu0 0.0
    %1168 = vmatpush1.msra.mxu0 %v103
    %1169 = vmatprep.subr.mxu0 0.0
    %1170 = vmatpush1.msra.mxu0 %v104
    %1171 = vmatprep.subr.mxu0 0.0
    %1172 = vmatpush1.msra.mxu0 0.0
    %1173 = vmatprep.subr.mxu0 0.0
    %1174 = vmatpush1.msra.mxu0 0.0
    %1175 = vmatprep.subr.mxu0 0.0
    %1176 = vmatpush1.msra.mxu0 0.0
    %1177 = vmatprep.subr.mxu0 0.0
    %1178 = vmatpush1.msra.mxu0 0.0
    %1179 = vmatprep.subr.mxu0 0.0
    %1180 = vmatpush1.msra.mxu0 0.0
    %1181 = vmatprep.subr.mxu0 0.0
    %1182 = vmatpush1.msra.mxu0 0.0
    %1183 = vmatprep.subr.mxu0 0.0
    %1184 = vmatpush1.msra.mxu0 0.0
    %1185 = vmatprep.subr.mxu0 0.0
    %1186 = vmatpush1.msra.mxu0 0.0
    %1187 = vmatprep.subr.mxu0 0.0
    %1188 = vmatpush1.msra.mxu0 0.0
    %1189 = vmatprep.subr.mxu0 0.0
    %1190 = vmatpush1.msra.mxu0 0.0
    %1191 = vmatprep.subr.mxu0 0.0
    %1192 = vmatpush1.msra.mxu0 0.0
    %1193 = vmatprep.subr.mxu0 0.0
    %1194 = vmatpush1.msra.mxu0 0.0
    %1195 = vmatprep.subr.mxu0 0.0
    %1196 = vmatpush1.msra.mxu0 0.0
    %1197 = vmatprep.subr.mxu0 0.0
    %1198 = vmatpush1.msra.mxu0 0.0
    %1199 = vmatprep.subr.mxu0 0.0
    %1200 = vmatpush1.msra.mxu0 0.0
    %1201 = vmatprep.subr.mxu0 0.0
    %1202 = vmatpush1.msra.mxu0 0.0
    %1203 = vmatprep.subr.mxu0 0.0
    %1204 = vmatpush1.msra.mxu0 0.0
    %1205 = vmatprep.subr.mxu0 0.0
    %1206 = vmatpush1.msra.mxu0 0.0
    %1207 = vmatprep.subr.mxu0 0.0
    %1208 = vmatpush1.msra.mxu0 0.0
    %1209 = vmatprep.subr.mxu0 0.0
    %1210 = vmatpush1.msra.mxu0 0.0
    %1211 = vmatprep.subr.mxu0 0.0
    %1212 = vmatpush1.msra.mxu0 0.0
    %1213 = vmatprep.subr.mxu0 0.0
    %1214 = vmatpush1.msra.mxu0 0.0
    %1215 = vmatprep.subr.mxu0 0.0
    %1216 = vmatpush1.msra.mxu0 0.0
    %1217 = vmatprep.subr.mxu0 0.0
    %1218 = vmatpush1.msra.mxu0 0.0
    %1219 = vmatprep.subr.mxu0 0.0
    %1220 = vmatpush1.msra.mxu0 0.0
    %1221 = vmatprep.subr.mxu0 0.0
    %1222 = vmatpush1.msra.mxu0 0.0
    %1223 = vmatprep.subr.mxu0 0.0
    %1224 = vmatpush1.msra.mxu0 0.0
    %1225 = vmatprep.subr.mxu0 0.0
    %1226 = vmatpush1.msra.mxu0 0.0
    %1227 = vmatprep.mubr.f32.mxu0 0.0
    %1228 = vmatmul.mubr.f32.gmra.mrb[0].mxu0 %v1161
    %v1229 = vpop.f32.mrb[0].mxu0
    %v1230 = vadd.f32 0.0, %v1229
    %v1231 = vpop.f32.mrb[0].mxu0
    %1232 = vdwg.mxu0
    %v1233 = vadd.f32 %v1157, %v1230
    %v1234 = vtanh.pop %v1233
    %1235 = vst.msk [vmem:[#allocation2 + $0x18] sm:$0xff] %vm255, %v1234
    %v1236 = vld [vmem:[#allocation2 + $0x28] sm:$0xff]
    %v1238 = vsel %vm255, %v1089, 0
    %1240 = vmatprep.subr.mxu0 0.0
    %1241 = vmatpush1.msra.mxu0 %v92
    %1242 = vmatprep.subr.mxu0 0.0
    %1243 = vmatpush1.msra.mxu0 %v93
    %1244 = vmatprep.subr.mxu0 0.0
    %1245 = vmatpush1.msra.mxu0 %v94
    %1246 = vmatprep.subr.mxu0 0.0
    %1247 = vmatpush1.msra.mxu0 %v95
    %1248 = vmatprep.subr.mxu0 0.0
    %1249 = vmatpush1.msra.mxu0 0.0
    %1250 = vmatprep.subr.mxu0 0.0
    %1251 = vmatpush1.msra.mxu0 0.0
    %1252 = vmatprep.subr.mxu0 0.0
    %1253 = vmatpush1.msra.mxu0 0.0
    %1254 = vmatprep.subr.mxu0 0.0
    %1255 = vmatpush1.msra.mxu0 0.0
    %1256 = vmatprep.subr.mxu0 0.0
    %1257 = vmatpush1.msra.mxu0 0.0
    %1258 = vmatprep.subr.mxu0 0.0
    %1259 = vmatpush1.msra.mxu0 0.0
    %1260 = vmatprep.subr.mxu0 0.0
    %1261 = vmatpush1.msra.mxu0 0.0
    %1262 = vmatprep.subr.mxu0 0.0
    %1263 = vmatpush1.msra.mxu0 0.0
    %1264 = vmatprep.subr.mxu0 0.0
    %1265 = vmatpush1.msra.mxu0 0.0
    %1266 = vmatprep.subr.mxu0 0.0
    %1267 = vmatpush1.msra.mxu0 0.0
    %1268 = vmatprep.subr.mxu0 0.0
    %1269 = vmatpush1.msra.mxu0 0.0
    %1270 = vmatprep.subr.mxu0 0.0
    %1271 = vmatpush1.msra.mxu0 0.0
    %1272 = vmatprep.subr.mxu0 0.0
    %1273 = vmatpush1.msra.mxu0 0.0
    %1274 = vmatprep.subr.mxu0 0.0
    %1275 = vmatpush1.msra.mxu0 0.0
    %1276 = vmatprep.subr.mxu0 0.0
    %1277 = vmatpush1.msra.mxu0 0.0
    %1278 = vmatprep.subr.mxu0 0.0
    %1279 = vmatpush1.msra.mxu0 0.0
    %1280 = vmatprep.subr.mxu0 0.0
    %1281 = vmatpush1.msra.mxu0 0.0
    %1282 = vmatprep.subr.mxu0 0.0
    %1283 = vmatpush1.msra.mxu0 0.0
    %1284 = vmatprep.subr.mxu0 0.0
    %1285 = vmatpush1.msra.mxu0 0.0
    %1286 = vmatprep.subr.mxu0 0.0
    %1287 = vmatpush1.msra.mxu0 0.0
    %1288 = vmatprep.subr.mxu0 0.0
    %1289 = vmatpush1.msra.mxu0 0.0
    %1290 = vmatprep.subr.mxu0 0.0
    %1291 = vmatpush1.msra.mxu0 0.0
    %1292 = vmatprep.subr.mxu0 0.0
    %1293 = vmatpush1.msra.mxu0 0.0
    %1294 = vmatprep.subr.mxu0 0.0
    %1295 = vmatpush1.msra.mxu0 0.0
    %1296 = vmatprep.subr.mxu0 0.0
    %1297 = vmatpush1.msra.mxu0 0.0
    %1298 = vmatprep.subr.mxu0 0.0
    %1299 = vmatpush1.msra.mxu0 0.0
    %1300 = vmatprep.subr.mxu0 0.0
    %1301 = vmatpush1.msra.mxu0 0.0
    %1302 = vmatprep.subr.mxu0 0.0
    %1303 = vmatpush1.msra.mxu0 0.0
    %1304 = vmatprep.mubr.f32.mxu0 0.0
    %1305 = vmatmul.mubr.f32.gmra.mrb[0].mxu0 %v1238
    %v1306 = vpop.f32.mrb[0].mxu0
    %v1307 = vadd.f32 0.0, %v1306
    %v1308 = vpop.f32.mrb[0].mxu0
    %1309 = vdwg.mxu0
    %v1310 = vadd.f32 %v1236, %v1307
    %v1311 = vtanh.pop %v1310
    %1312 = vmatprep.subr.mxu0 0.0
    %1313 = vmatpush1.msra.mxu0 %v97
    %1314 = vmatprep.subr.mxu0 0.0
    %1315 = vmatpush1.msra.mxu0 %v98
    %1316 = vmatprep.subr.mxu0 0.0
    %1317 = vmatpush1.msra.mxu0 %v99
    %1318 = vmatprep.subr.mxu0 0.0
    %1319 = vmatpush1.msra.mxu0 %v100
    %1320 = vmatprep.subr.mxu0 0.0
    %1321 = vmatpush1.msra.mxu0 0.0
    %1322 = vmatprep.subr.mxu0 0.0
    %1323 = vmatpush1.msra.mxu0 0.0
    %1324 = vmatprep.subr.mxu0 0.0
    %1325 = vmatpush1.msra.mxu0 0.0
    %1326 = vmatprep.subr.mxu0 0.0
    %1327 = vmatpush1.msra.mxu0 0.0
    %1328 = vmatprep.subr.mxu0 0.0
    %1329 = vmatpush1.msra.mxu0 0.0
    %1330 = vmatprep.subr.mxu0 0.0
    %1331 = vmatpush1.msra.mxu0 0.0
    %1332 = vmatprep.subr.mxu0 0.0
    %1333 = vmatpush1.msra.mxu0 0.0
    %1334 = vmatprep.subr.mxu0 0.0
    %1335 = vmatpush1.msra.mxu0 0.0
    %1336 = vmatprep.subr.mxu0 0.0
    %1337 = vmatpush1.msra.mxu0 0.0
    %1338 = vmatprep.subr.mxu0 0.0
    %1339 = vmatpush1.msra.mxu0 0.0
    %1340 = vmatprep.subr.mxu0 0.0
    %1341 = vmatpush1.msra.mxu0 0.0
    %1342 = vmatprep.subr.mxu0 0.0
    %1343 = vmatpush1.msra.mxu0 0.0
    %1344 = vmatprep.subr.mxu0 0.0
    %1345 = vmatpush1.msra.mxu0 0.0
    %1346 = vmatprep.subr.mxu0 0.0
    %1347 = vmatpush1.msra.mxu0 0.0
    %1348 = vmatprep.subr.mxu0 0.0
    %1349 = vmatpush1.msra.mxu0 0.0
    %1350 = vmatprep.subr.mxu0 0.0
    %1351 = vmatpush1.msra.mxu0 0.0
    %1352 = vmatprep.subr.mxu0 0.0
    %1353 = vmatpush1.msra.mxu0 0.0
    %1354 = vmatprep.subr.mxu0 0.0
    %1355 = vmatpush1.msra.mxu0 0.0
    %1356 = vmatprep.subr.mxu0 0.0
    %1357 = vmatpush1.msra.mxu0 0.0
    %1358 = vmatprep.subr.mxu0 0.0
    %1359 = vmatpush1.msra.mxu0 0.0
    %1360 = vmatprep.subr.mxu0 0.0
    %1361 = vmatpush1.msra.mxu0 0.0
    %1362 = vmatprep.subr.mxu0 0.0
    %1363 = vmatpush1.msra.mxu0 0.0
    %1364 = vmatprep.subr.mxu0 0.0
    %1365 = vmatpush1.msra.mxu0 0.0
    %1366 = vmatprep.subr.mxu0 0.0
    %1367 = vmatpush1.msra.mxu0 0.0
    %1368 = vmatprep.subr.mxu0 0.0
    %1369 = vmatpush1.msra.mxu0 0.0
    %1370 = vmatprep.subr.mxu0 0.0
    %1371 = vmatpush1.msra.mxu0 0.0
    %1372 = vmatprep.subr.mxu0 0.0
    %1373 = vmatpush1.msra.mxu0 0.0
    %1374 = vmatprep.subr.mxu0 0.0
    %1375 = vmatpush1.msra.mxu0 0.0
    %1376 = vmatprep.mubr.f32.mxu0 0.0
    %1377 = vmatmul.mubr.f32.gmra.mrb[0].mxu0 %v1238
    %v1378 = vpop.f32.mrb[0].mxu0
    %v1379 = vadd.f32 %v422, %v1378
    %v1380 = vpop.f32.mrb[0].mxu0
    %1381 = vdwg.mxu0
    %v1383 = vsel %vm255, %v1234, 0
    %1385 = vmatprep.subr.mxu0 0.0
    %1386 = vmatpush1.msra.mxu0 %v101
    %1387 = vmatprep.subr.mxu0 0.0
    %1388 = vmatpush1.msra.mxu0 %v102
    %1389 = vmatprep.subr.mxu0 0.0
    %1390 = vmatpush1.msra.mxu0 %v103
    %1391 = vmatprep.subr.mxu0 0.0
    %1392 = vmatpush1.msra.mxu0 %v104
    %1393 = vmatprep.subr.mxu0 0.0
    %1394 = vmatpush1.msra.mxu0 0.0
    %1395 = vmatprep.subr.mxu0 0.0
    %1396 = vmatpush1.msra.mxu0 0.0
    %1397 = vmatprep.subr.mxu0 0.0
    %1398 = vmatpush1.msra.mxu0 0.0
    %1399 = vmatprep.subr.mxu0 0.0
    %1400 = vmatpush1.msra.mxu0 0.0
    %1401 = vmatprep.subr.mxu0 0.0
    %1402 = vmatpush1.msra.mxu0 0.0
    %1403 = vmatprep.subr.mxu0 0.0
    %1404 = vmatpush1.msra.mxu0 0.0
    %1405 = vmatprep.subr.mxu0 0.0
    %1406 = vmatpush1.msra.mxu0 0.0
    %1407 = vmatprep.subr.mxu0 0.0
    %1408 = vmatpush1.msra.mxu0 0.0
    %1409 = vmatprep.subr.mxu0 0.0
    %1410 = vmatpush1.msra.mxu0 0.0
    %1411 = vmatprep.subr.mxu0 0.0
    %1412 = vmatpush1.msra.mxu0 0.0
    %1413 = vmatprep.subr.mxu0 0.0
    %1414 = vmatpush1.msra.mxu0 0.0
    %1415 = vmatprep.subr.mxu0 0.0
    %1416 = vmatpush1.msra.mxu0 0.0
    %1417 = vmatprep.subr.mxu0 0.0
    %1418 = vmatpush1.msra.mxu0 0.0
    %1419 = vmatprep.subr.mxu0 0.0
    %1420 = vmatpush1.msra.mxu0 0.0
    %1421 = vmatprep.subr.mxu0 0.0
    %1422 = vmatpush1.msra.mxu0 0.0
    %1423 = vmatprep.subr.mxu0 0.0
    %1424 = vmatpush1.msra.mxu0 0.0
    %1425 = vmatprep.subr.mxu0 0.0
    %1426 = vmatpush1.msra.mxu0 0.0
    %1427 = vmatprep.subr.mxu0 0.0
    %1428 = vmatpush1.msra.mxu0 0.0
    %1429 = vmatprep.subr.mxu0 0.0
    %1430 = vmatpush1.msra.mxu0 0.0
    %1431 = vmatprep.subr.mxu0 0.0
    %1432 = vmatpush1.msra.mxu0 0.0
    %1433 = vmatprep.subr.mxu0 0.0
    %1434 = vmatpush1.msra.mxu0 0.0
    %1435 = vmatprep.subr.mxu0 0.0
    %1436 = vmatpush1.msra.mxu0 0.0
    %1437 = vmatprep.subr.mxu0 0.0
    %1438 = vmatpush1.msra.mxu0 0.0
    %1439 = vmatprep.subr.mxu0 0.0
    %1440 = vmatpush1.msra.mxu0 0.0
    %1441 = vmatprep.subr.mxu0 0.0
    %1442 = vmatpush1.msra.mxu0 0.0
    %1443 = vmatprep.subr.mxu0 0.0
    %1444 = vmatpush1.msra.mxu0 0.0
    %1445 = vmatprep.subr.mxu0 0.0
    %1446 = vmatpush1.msra.mxu0 0.0
    %1447 = vmatprep.subr.mxu0 0.0
    %1448 = vmatpush1.msra.mxu0 0.0
    %1449 = vmatprep.mubr.f32.mxu0 0.0
    %1450 = vmatmul.mubr.f32.gmra.mrb[0].mxu0 %v1383
    %v1451 = vpop.f32.mrb[0].mxu0
    %v1452 = vadd.f32 0.0, %v1451
    %v1453 = vpop.f32.mrb[0].mxu0
    %1454 = vdwg.mxu0
    %v1455 = vadd.f32 %v1379, %v1452
    %v1456 = vtanh.pop %v1455
    %1457 = vst.msk [vmem:[#allocation2 + $0x20] sm:$0xff] %vm255, %v1456
    %v1458 = vld [vmem:[#allocation2 + $0x30] sm:$0xff]
    %v1460 = vsel %vm255, %v1311, 0
    %1462 = vmatprep.subr.mxu0 0.0
    %1463 = vmatpush1.msra.mxu0 %v92
    %1464 = vmatprep.subr.mxu0 0.0
    %1465 = vmatpush1.msra.mxu0 %v93
    %1466 = vmatprep.subr.mxu0 0.0
    %1467 = vmatpush1.msra.mxu0 %v94
    %1468 = vmatprep.subr.mxu0 0.0
    %1469 = vmatpush1.msra.mxu0 %v95
    %1470 = vmatprep.subr.mxu0 0.0
    %1471 = vmatpush1.msra.mxu0 0.0
    %1472 = vmatprep.subr.mxu0 0.0
    %1473 = vmatpush1.msra.mxu0 0.0
    %1474 = vmatprep.subr.mxu0 0.0
    %1475 = vmatpush1.msra.mxu0 0.0
    %1476 = vmatprep.subr.mxu0 0.0
    %1477 = vmatpush1.msra.mxu0 0.0
    %1478 = vmatprep.subr.mxu0 0.0
    %1479 = vmatpush1.msra.mxu0 0.0
    %1480 = vmatprep.subr.mxu0 0.0
    %1481 = vmatpush1.msra.mxu0 0.0
    %1482 = vmatprep.subr.mxu0 0.0
    %1483 = vmatpush1.msra.mxu0 0.0
    %1484 = vmatprep.subr.mxu0 0.0
    %1485 = vmatpush1.msra.mxu0 0.0
    %1486 = vmatprep.subr.mxu0 0.0
    %1487 = vmatpush1.msra.mxu0 0.0
    %1488 = vmatprep.subr.mxu0 0.0
    %1489 = vmatpush1.msra.mxu0 0.0
    %1490 = vmatprep.subr.mxu0 0.0
    %1491 = vmatpush1.msra.mxu0 0.0
    %1492 = vmatprep.subr.mxu0 0.0
    %1493 = vmatpush1.msra.mxu0 0.0
    %1494 = vmatprep.subr.mxu0 0.0
    %1495 = vmatpush1.msra.mxu0 0.0
    %1496 = vmatprep.subr.mxu0 0.0
    %1497 = vmatpush1.msra.mxu0 0.0
    %1498 = vmatprep.subr.mxu0 0.0
    %1499 = vmatpush1.msra.mxu0 0.0
    %1500 = vmatprep.subr.mxu0 0.0
    %1501 = vmatpush1.msra.mxu0 0.0
    %1502 = vmatprep.subr.mxu0 0.0
    %1503 = vmatpush1.msra.mxu0 0.0
    %1504 = vmatprep.subr.mxu0 0.0
    %1505 = vmatpush1.msra.mxu0 0.0
    %1506 = vmatprep.subr.mxu0 0.0
    %1507 = vmatpush1.msra.mxu0 0.0
    %1508 = vmatprep.subr.mxu0 0.0
    %1509 = vmatpush1.msra.mxu0 0.0
    %1510 = vmatprep.subr.mxu0 0.0
    %1511 = vmatpush1.msra.mxu0 0.0
    %1512 = vmatprep.subr.mxu0 0.0
    %1513 = vmatpush1.msra.mxu0 0.0
    %1514 = vmatprep.subr.mxu0 0.0
    %1515 = vmatpush1.msra.mxu0 0.0
    %1516 = vmatprep.subr.mxu0 0.0
    %1517 = vmatpush1.msra.mxu0 0.0
    %1518 = vmatprep.subr.mxu0 0.0
    %1519 = vmatpush1.msra.mxu0 0.0
    %1520 = vmatprep.subr.mxu0 0.0
    %1521 = vmatpush1.msra.mxu0 0.0
    %1522 = vmatprep.subr.mxu0 0.0
    %1523 = vmatpush1.msra.mxu0 0.0
    %1524 = vmatprep.subr.mxu0 0.0
    %1525 = vmatpush1.msra.mxu0 0.0
    %1526 = vmatprep.mubr.f32.mxu0 0.0
    %1527 = vmatmul.mubr.f32.gmra.mrb[0].mxu0 %v1460
    %v1528 = vpop.f32.mrb[0].mxu0
    %v1529 = vadd.f32 0.0, %v1528
    %v1530 = vpop.f32.mrb[0].mxu0
    %1531 = vdwg.mxu0
    %v1532 = vadd.f32 %v1458, %v1529
    %v1533 = vtanh.pop %v1532
    %1534 = vmatprep.subr.mxu0 0.0
    %1535 = vmatpush1.msra.mxu0 %v97
    %1536 = vmatprep.subr.mxu0 0.0
    %1537 = vmatpush1.msra.mxu0 %v98
    %1538 = vmatprep.subr.mxu0 0.0
    %1539 = vmatpush1.msra.mxu0 %v99
    %1540 = vmatprep.subr.mxu0 0.0
    %1541 = vmatpush1.msra.mxu0 %v100
    %1542 = vmatprep.subr.mxu0 0.0
    %1543 = vmatpush1.msra.mxu0 0.0
    %1544 = vmatprep.subr.mxu0 0.0
    %1545 = vmatpush1.msra.mxu0 0.0
    %1546 = vmatprep.subr.mxu0 0.0
    %1547 = vmatpush1.msra.mxu0 0.0
    %1548 = vmatprep.subr.mxu0 0.0
    %1549 = vmatpush1.msra.mxu0 0.0
    %1550 = vmatprep.subr.mxu0 0.0
    %1551 = vmatpush1.msra.mxu0 0.0
    %1552 = vmatprep.subr.mxu0 0.0
    %1553 = vmatpush1.msra.mxu0 0.0
    %1554 = vmatprep.subr.mxu0 0.0
    %1555 = vmatpush1.msra.mxu0 0.0
    %1556 = vmatprep.subr.mxu0 0.0
    %1557 = vmatpush1.msra.mxu0 0.0
    %1558 = vmatprep.subr.mxu0 0.0
    %1559 = vmatpush1.msra.mxu0 0.0
    %1560 = vmatprep.subr.mxu0 0.0
    %1561 = vmatpush1.msra.mxu0 0.0
    %1562 = vmatprep.subr.mxu0 0.0
    %1563 = vmatpush1.msra.mxu0 0.0
    %1564 = vmatprep.subr.mxu0 0.0
    %1565 = vmatpush1.msra.mxu0 0.0
    %1566 = vmatprep.subr.mxu0 0.0
    %1567 = vmatpush1.msra.mxu0 0.0
    %1568 = vmatprep.subr.mxu0 0.0
    %1569 = vmatpush1.msra.mxu0 0.0
    %1570 = vmatprep.subr.mxu0 0.0
    %1571 = vmatpush1.msra.mxu0 0.0
    %1572 = vmatprep.subr.mxu0 0.0
    %1573 = vmatpush1.msra.mxu0 0.0
    %1574 = vmatprep.subr.mxu0 0.0
    %1575 = vmatpush1.msra.mxu0 0.0
    %1576 = vmatprep.subr.mxu0 0.0
    %1577 = vmatpush1.msra.mxu0 0.0
    %1578 = vmatprep.subr.mxu0 0.0
    %1579 = vmatpush1.msra.mxu0 0.0
    %1580 = vmatprep.subr.mxu0 0.0
    %1581 = vmatpush1.msra.mxu0 0.0
    %1582 = vmatprep.subr.mxu0 0.0
    %1583 = vmatpush1.msra.mxu0 0.0
    %1584 = vmatprep.subr.mxu0 0.0
    %1585 = vmatpush1.msra.mxu0 0.0
    %1586 = vmatprep.subr.mxu0 0.0
    %1587 = vmatpush1.msra.mxu0 0.0
    %1588 = vmatprep.subr.mxu0 0.0
    %1589 = vmatpush1.msra.mxu0 0.0
    %1590 = vmatprep.subr.mxu0 0.0
    %1591 = vmatpush1.msra.mxu0 0.0
    %1592 = vmatprep.subr.mxu0 0.0
    %1593 = vmatpush1.msra.mxu0 0.0
    %1594 = vmatprep.subr.mxu0 0.0
    %1595 = vmatpush1.msra.mxu0 0.0
    %1596 = vmatprep.subr.mxu0 0.0
    %1597 = vmatpush1.msra.mxu0 0.0
    %1598 = vmatprep.mubr.f32.mxu0 0.0
    %1599 = vmatmul.mubr.f32.gmra.mrb[0].mxu0 %v1460
    %v1600 = vpop.f32.mrb[0].mxu0
    %v1601 = vadd.f32 %v422, %v1600
    %v1602 = vpop.f32.mrb[0].mxu0
    %1603 = vdwg.mxu0
    %v1605 = vsel %vm255, %v1456, 0
    %1607 = vmatprep.subr.mxu0 0.0
    %1608 = vmatpush1.msra.mxu0 %v101
    %1609 = vmatprep.subr.mxu0 0.0
    %1610 = vmatpush1.msra.mxu0 %v102
    %1611 = vmatprep.subr.mxu0 0.0
    %1612 = vmatpush1.msra.mxu0 %v103
    %1613 = vmatprep.subr.mxu0 0.0
    %1614 = vmatpush1.msra.mxu0 %v104
    %1615 = vmatprep.subr.mxu0 0.0
    %1616 = vmatpush1.msra.mxu0 0.0
    %1617 = vmatprep.subr.mxu0 0.0
    %1618 = vmatpush1.msra.mxu0 0.0
    %1619 = vmatprep.subr.mxu0 0.0
    %1620 = vmatpush1.msra.mxu0 0.0
    %1621 = vmatprep.subr.mxu0 0.0
    %1622 = vmatpush1.msra.mxu0 0.0
    %1623 = vmatprep.subr.mxu0 0.0
    %1624 = vmatpush1.msra.mxu0 0.0
    %1625 = vmatprep.subr.mxu0 0.0
    %1626 = vmatpush1.msra.mxu0 0.0
    %1627 = vmatprep.subr.mxu0 0.0
    %1628 = vmatpush1.msra.mxu0 0.0
    %1629 = vmatprep.subr.mxu0 0.0
    %1630 = vmatpush1.msra.mxu0 0.0
    %1631 = vmatprep.subr.mxu0 0.0
    %1632 = vmatpush1.msra.mxu0 0.0
    %1633 = vmatprep.subr.mxu0 0.0
    %1634 = vmatpush1.msra.mxu0 0.0
    %1635 = vmatprep.subr.mxu0 0.0
    %1636 = vmatpush1.msra.mxu0 0.0
    %1637 = vmatprep.subr.mxu0 0.0
    %1638 = vmatpush1.msra.mxu0 0.0
    %1639 = vmatprep.subr.mxu0 0.0
    %1640 = vmatpush1.msra.mxu0 0.0
    %1641 = vmatprep.subr.mxu0 0.0
    %1642 = vmatpush1.msra.mxu0 0.0
    %1643 = vmatprep.subr.mxu0 0.0
    %1644 = vmatpush1.msra.mxu0 0.0
    %1645 = vmatprep.subr.mxu0 0.0
    %1646 = vmatpush1.msra.mxu0 0.0
    %1647 = vmatprep.subr.mxu0 0.0
    %1648 = vmatpush1.msra.mxu0 0.0
    %1649 = vmatprep.subr.mxu0 0.0
    %1650 = vmatpush1.msra.mxu0 0.0
    %1651 = vmatprep.subr.mxu0 0.0
    %1652 = vmatpush1.msra.mxu0 0.0
    %1653 = vmatprep.subr.mxu0 0.0
    %1654 = vmatpush1.msra.mxu0 0.0
    %1655 = vmatprep.subr.mxu0 0.0
    %1656 = vmatpush1.msra.mxu0 0.0
    %1657 = vmatprep.subr.mxu0 0.0
    %1658 = vmatpush1.msra.mxu0 0.0
    %1659 = vmatprep.subr.mxu0 0.0
    %1660 = vmatpush1.msra.mxu0 0.0
    %1661 = vmatprep.subr.mxu0 0.0
    %1662 = vmatpush1.msra.mxu0 0.0
    %1663 = vmatprep.subr.mxu0 0.0
    %1664 = vmatpush1.msra.mxu0 0.0
    %1665 = vmatprep.subr.mxu0 0.0
    %1666 = vmatpush1.msra.mxu0 0.0
    %1667 = vmatprep.subr.mxu0 0.0
    %1668 = vmatpush1.msra.mxu0 0.0
    %1669 = vmatprep.subr.mxu0 0.0
    %1670 = vmatpush1.msra.mxu0 0.0
    %1671 = vmatprep.mubr.f32.mxu0 0.0
    %1672 = vmatmul.mubr.f32.gmra.mrb[0].mxu0 %v1605
    %v1673 = vpop.f32.mrb[0].mxu0
    %v1674 = vadd.f32 0.0, %v1673
    %v1675 = vpop.f32.mrb[0].mxu0
    %1676 = vdwg.mxu0
    %v1677 = vadd.f32 %v1601, %v1674
    %v1678 = vtanh.pop %v1677
    %1679 = vst.msk [vmem:[#allocation2 + $0x28] sm:$0xff] %vm255, %v1678
    %v1680 = vld [vmem:[#allocation2 + $0x38] sm:$0xff]
    %v1682 = vsel %vm255, %v1533, 0
    %1684 = vmatprep.subr.mxu0 0.0
    %1685 = vmatpush1.msra.mxu0 %v92
    %1686 = vmatprep.subr.mxu0 0.0
    %1687 = vmatpush1.msra.mxu0 %v93
    %1688 = vmatprep.subr.mxu0 0.0
    %1689 = vmatpush1.msra.mxu0 %v94
    %1690 = vmatprep.subr.mxu0 0.0
    %1691 = vmatpush1.msra.mxu0 %v95
    %1692 = vmatprep.subr.mxu0 0.0
    %1693 = vmatpush1.msra.mxu0 0.0
    %1694 = vmatprep.subr.mxu0 0.0
    %1695 = vmatpush1.msra.mxu0 0.0
    %1696 = vmatprep.subr.mxu0 0.0
    %1697 = vmatpush1.msra.mxu0 0.0
    %1698 = vmatprep.subr.mxu0 0.0
    %1699 = vmatpush1.msra.mxu0 0.0
    %1700 = vmatprep.subr.mxu0 0.0
    %1701 = vmatpush1.msra.mxu0 0.0
    %1702 = vmatprep.subr.mxu0 0.0
    %1703 = vmatpush1.msra.mxu0 0.0
    %1704 = vmatprep.subr.mxu0 0.0
    %1705 = vmatpush1.msra.mxu0 0.0
    %1706 = vmatprep.subr.mxu0 0.0
    %1707 = vmatpush1.msra.mxu0 0.0
    %1708 = vmatprep.subr.mxu0 0.0
    %1709 = vmatpush1.msra.mxu0 0.0
    %1710 = vmatprep.subr.mxu0 0.0
    %1711 = vmatpush1.msra.mxu0 0.0
    %1712 = vmatprep.subr.mxu0 0.0
    %1713 = vmatpush1.msra.mxu0 0.0
    %1714 = vmatprep.subr.mxu0 0.0
    %1715 = vmatpush1.msra.mxu0 0.0
    %1716 = vmatprep.subr.mxu0 0.0
    %1717 = vmatpush1.msra.mxu0 0.0
    %1718 = vmatprep.subr.mxu0 0.0
    %1719 = vmatpush1.msra.mxu0 0.0
    %1720 = vmatprep.subr.mxu0 0.0
    %1721 = vmatpush1.msra.mxu0 0.0
    %1722 = vmatprep.subr.mxu0 0.0
    %1723 = vmatpush1.msra.mxu0 0.0
    %1724 = vmatprep.subr.mxu0 0.0
    %1725 = vmatpush1.msra.mxu0 0.0
    %1726 = vmatprep.subr.mxu0 0.0
    %1727 = vmatpush1.msra.mxu0 0.0
    %1728 = vmatprep.subr.mxu0 0.0
    %1729 = vmatpush1.msra.mxu0 0.0
    %1730 = vmatprep.subr.mxu0 0.0
    %1731 = vmatpush1.msra.mxu0 0.0
    %1732 = vmatprep.subr.mxu0 0.0
    %1733 = vmatpush1.msra.mxu0 0.0
    %1734 = vmatprep.subr.mxu0 0.0
    %1735 = vmatpush1.msra.mxu0 0.0
    %1736 = vmatprep.subr.mxu0 0.0
    %1737 = vmatpush1.msra.mxu0 0.0
    %1738 = vmatprep.subr.mxu0 0.0
    %1739 = vmatpush1.msra.mxu0 0.0
    %1740 = vmatprep.subr.mxu0 0.0
    %1741 = vmatpush1.msra.mxu0 0.0
    %1742 = vmatprep.subr.mxu0 0.0
    %1743 = vmatpush1.msra.mxu0 0.0
    %1744 = vmatprep.subr.mxu0 0.0
    %1745 = vmatpush1.msra.mxu0 0.0
    %1746 = vmatprep.subr.mxu0 0.0
    %1747 = vmatpush1.msra.mxu0 0.0
    %1748 = vmatprep.mubr.f32.mxu0 0.0
    %1749 = vmatmul.mubr.f32.gmra.mrb[0].mxu0 %v1682
    %v1750 = vpop.f32.mrb[0].mxu0
    %v1751 = vadd.f32 0.0, %v1750
    %v1752 = vpop.f32.mrb[0].mxu0
    %1753 = vdwg.mxu0
    %v1754 = vadd.f32 %v1680, %v1751
    %v1755 = vtanh.pop %v1754
    %1756 = vmatprep.subr.mxu0 0.0
    %1757 = vmatpush1.msra.mxu0 %v97
    %1758 = vmatprep.subr.mxu0 0.0
    %1759 = vmatpush1.msra.mxu0 %v98
    %1760 = vmatprep.subr.mxu0 0.0
    %1761 = vmatpush1.msra.mxu0 %v99
    %1762 = vmatprep.subr.mxu0 0.0
    %1763 = vmatpush1.msra.mxu0 %v100
    %1764 = vmatprep.subr.mxu0 0.0
    %1765 = vmatpush1.msra.mxu0 0.0
    %1766 = vmatprep.subr.mxu0 0.0
    %1767 = vmatpush1.msra.mxu0 0.0
    %1768 = vmatprep.subr.mxu0 0.0
    %1769 = vmatpush1.msra.mxu0 0.0
    %1770 = vmatprep.subr.mxu0 0.0
    %1771 = vmatpush1.msra.mxu0 0.0
    %1772 = vmatprep.subr.mxu0 0.0
    %1773 = vmatpush1.msra.mxu0 0.0
    %1774 = vmatprep.subr.mxu0 0.0
    %1775 = vmatpush1.msra.mxu0 0.0
    %1776 = vmatprep.subr.mxu0 0.0
    %1777 = vmatpush1.msra.mxu0 0.0
    %1778 = vmatprep.subr.mxu0 0.0
    %1779 = vmatpush1.msra.mxu0 0.0
    %1780 = vmatprep.subr.mxu0 0.0
    %1781 = vmatpush1.msra.mxu0 0.0
    %1782 = vmatprep.subr.mxu0 0.0
    %1783 = vmatpush1.msra.mxu0 0.0
    %1784 = vmatprep.subr.mxu0 0.0
    %1785 = vmatpush1.msra.mxu0 0.0
    %1786 = vmatprep.subr.mxu0 0.0
    %1787 = vmatpush1.msra.mxu0 0.0
    %1788 = vmatprep.subr.mxu0 0.0
    %1789 = vmatpush1.msra.mxu0 0.0
    %1790 = vmatprep.subr.mxu0 0.0
    %1791 = vmatpush1.msra.mxu0 0.0
    %1792 = vmatprep.subr.mxu0 0.0
    %1793 = vmatpush1.msra.mxu0 0.0
    %1794 = vmatprep.subr.mxu0 0.0
    %1795 = vmatpush1.msra.mxu0 0.0
    %1796 = vmatprep.subr.mxu0 0.0
    %1797 = vmatpush1.msra.mxu0 0.0
    %1798 = vmatprep.subr.mxu0 0.0
    %1799 = vmatpush1.msra.mxu0 0.0
    %1800 = vmatprep.subr.mxu0 0.0
    %1801 = vmatpush1.msra.mxu0 0.0
    %1802 = vmatprep.subr.mxu0 0.0
    %1803 = vmatpush1.msra.mxu0 0.0
    %1804 = vmatprep.subr.mxu0 0.0
    %1805 = vmatpush1.msra.mxu0 0.0
    %1806 = vmatprep.subr.mxu0 0.0
    %1807 = vmatpush1.msra.mxu0 0.0
    %1808 = vmatprep.subr.mxu0 0.0
    %1809 = vmatpush1.msra.mxu0 0.0
    %1810 = vmatprep.subr.mxu0 0.0
    %1811 = vmatpush1.msra.mxu0 0.0
    %1812 = vmatprep.subr.mxu0 0.0
    %1813 = vmatpush1.msra.mxu0 0.0
    %1814 = vmatprep.subr.mxu0 0.0
    %1815 = vmatpush1.msra.mxu0 0.0
    %1816 = vmatprep.subr.mxu0 0.0
    %1817 = vmatpush1.msra.mxu0 0.0
    %1818 = vmatprep.subr.mxu0 0.0
    %1819 = vmatpush1.msra.mxu0 0.0
    %1820 = vmatprep.mubr.f32.mxu0 0.0
    %1821 = vmatmul.mubr.f32.gmra.mrb[0].mxu0 %v1682
    %v1822 = vpop.f32.mrb[0].mxu0
    %v1823 = vadd.f32 %v422, %v1822
    %v1824 = vpop.f32.mrb[0].mxu0
    %1825 = vdwg.mxu0
    %v1827 = vsel %vm255, %v1678, 0
    %1829 = vmatprep.subr.mxu0 0.0
    %1830 = vmatpush1.msra.mxu0 %v101
    %1831 = vmatprep.subr.mxu0 0.0
    %1832 = vmatpush1.msra.mxu0 %v102
    %1833 = vmatprep.subr.mxu0 0.0
    %1834 = vmatpush1.msra.mxu0 %v103
    %1835 = vmatprep.subr.mxu0 0.0
    %1836 = vmatpush1.msra.mxu0 %v104
    %1837 = vmatprep.subr.mxu0 0.0
    %1838 = vmatpush1.msra.mxu0 0.0
    %1839 = vmatprep.subr.mxu0 0.0
    %1840 = vmatpush1.msra.mxu0 0.0
    %1841 = vmatprep.subr.mxu0 0.0
    %1842 = vmatpush1.msra.mxu0 0.0
    %1843 = vmatprep.subr.mxu0 0.0
    %1844 = vmatpush1.msra.mxu0 0.0
    %1845 = vmatprep.subr.mxu0 0.0
    %1846 = vmatpush1.msra.mxu0 0.0
    %1847 = vmatprep.subr.mxu0 0.0
    %1848 = vmatpush1.msra.mxu0 0.0
    %1849 = vmatprep.subr.mxu0 0.0
    %1850 = vmatpush1.msra.mxu0 0.0
    %1851 = vmatprep.subr.mxu0 0.0
    %1852 = vmatpush1.msra.mxu0 0.0
    %1853 = vmatprep.subr.mxu0 0.0
    %1854 = vmatpush1.msra.mxu0 0.0
    %1855 = vmatprep.subr.mxu0 0.0
    %1856 = vmatpush1.msra.mxu0 0.0
    %1857 = vmatprep.subr.mxu0 0.0
    %1858 = vmatpush1.msra.mxu0 0.0
    %1859 = vmatprep.subr.mxu0 0.0
    %1860 = vmatpush1.msra.mxu0 0.0
    %1861 = vmatprep.subr.mxu0 0.0
    %1862 = vmatpush1.msra.mxu0 0.0
    %1863 = vmatprep.subr.mxu0 0.0
    %1864 = vmatpush1.msra.mxu0 0.0
    %1865 = vmatprep.subr.mxu0 0.0
    %1866 = vmatpush1.msra.mxu0 0.0
    %1867 = vmatprep.subr.mxu0 0.0
    %1868 = vmatpush1.msra.mxu0 0.0
    %1869 = vmatprep.subr.mxu0 0.0
    %1870 = vmatpush1.msra.mxu0 0.0
    %1871 = vmatprep.subr.mxu0 0.0
    %1872 = vmatpush1.msra.mxu0 0.0
    %1873 = vmatprep.subr.mxu0 0.0
    %1874 = vmatpush1.msra.mxu0 0.0
    %1875 = vmatprep.subr.mxu0 0.0
    %1876 = vmatpush1.msra.mxu0 0.0
    %1877 = vmatprep.subr.mxu0 0.0
    %1878 = vmatpush1.msra.mxu0 0.0
    %1879 = vmatprep.subr.mxu0 0.0
    %1880 = vmatpush1.msra.mxu0 0.0
    %1881 = vmatprep.subr.mxu0 0.0
    %1882 = vmatpush1.msra.mxu0 0.0
    %1883 = vmatprep.subr.mxu0 0.0
    %1884 = vmatpush1.msra.mxu0 0.0
    %1885 = vmatprep.subr.mxu0 0.0
    %1886 = vmatpush1.msra.mxu0 0.0
    %1887 = vmatprep.subr.mxu0 0.0
    %1888 = vmatpush1.msra.mxu0 0.0
    %1889 = vmatprep.subr.mxu0 0.0
    %1890 = vmatpush1.msra.mxu0 0.0
    %1891 = vmatprep.subr.mxu0 0.0
    %1892 = vmatpush1.msra.mxu0 0.0
    %1893 = vmatprep.mubr.f32.mxu0 0.0
    %1894 = vmatmul.mubr.f32.gmra.mrb[0].mxu0 %v1827
    %v1895 = vpop.f32.mrb[0].mxu0
    %v1896 = vadd.f32 0.0, %v1895
    %v1897 = vpop.f32.mrb[0].mxu0
    %1898 = vdwg.mxu0
    %v1899 = vadd.f32 %v1823, %v1896
    %v1900 = vtanh.pop %v1899
    %1901 = vst.msk [vmem:[#allocation2 + $0x30] sm:$0xff] %vm255, %v1900
    %v1903 = vsel %vm255, %v1755, 0
    %1905 = vmatprep.subr.mxu0 0.0
    %1906 = vmatpush1.msra.mxu0 %v97
    %1907 = vmatprep.subr.mxu0 0.0
    %1908 = vmatpush1.msra.mxu0 %v98
    %1909 = vmatprep.subr.mxu0 0.0
    %1910 = vmatpush1.msra.mxu0 %v99
    %1911 = vmatprep.subr.mxu0 0.0
    %1912 = vmatpush1.msra.mxu0 %v100
    %1913 = vmatprep.subr.mxu0 0.0
    %1914 = vmatpush1.msra.mxu0 0.0
    %1915 = vmatprep.subr.mxu0 0.0
    %1916 = vmatpush1.msra.mxu0 0.0
    %1917 = vmatprep.subr.mxu0 0.0
    %1918 = vmatpush1.msra.mxu0 0.0
    %1919 = vmatprep.subr.mxu0 0.0
    %1920 = vmatpush1.msra.mxu0 0.0
    %1921 = vmatprep.subr.mxu0 0.0
    %1922 = vmatpush1.msra.mxu0 0.0
    %1923 = vmatprep.subr.mxu0 0.0
    %1924 = vmatpush1.msra.mxu0 0.0
    %1925 = vmatprep.subr.mxu0 0.0
    %1926 = vmatpush1.msra.mxu0 0.0
    %1927 = vmatprep.subr.mxu0 0.0
    %1928 = vmatpush1.msra.mxu0 0.0
    %1929 = vmatprep.subr.mxu0 0.0
    %1930 = vmatpush1.msra.mxu0 0.0
    %1931 = vmatprep.subr.mxu0 0.0
    %1932 = vmatpush1.msra.mxu0 0.0
    %1933 = vmatprep.subr.mxu0 0.0
    %1934 = vmatpush1.msra.mxu0 0.0
    %1935 = vmatprep.subr.mxu0 0.0
    %1936 = vmatpush1.msra.mxu0 0.0
    %1937 = vmatprep.subr.mxu0 0.0
    %1938 = vmatpush1.msra.mxu0 0.0
    %1939 = vmatprep.subr.mxu0 0.0
    %1940 = vmatpush1.msra.mxu0 0.0
    %1941 = vmatprep.subr.mxu0 0.0
    %1942 = vmatpush1.msra.mxu0 0.0
    %1943 = vmatprep.subr.mxu0 0.0
    %1944 = vmatpush1.msra.mxu0 0.0
    %1945 = vmatprep.subr.mxu0 0.0
    %1946 = vmatpush1.msra.mxu0 0.0
    %1947 = vmatprep.subr.mxu0 0.0
    %1948 = vmatpush1.msra.mxu0 0.0
    %1949 = vmatprep.subr.mxu0 0.0
    %1950 = vmatpush1.msra.mxu0 0.0
    %1951 = vmatprep.subr.mxu0 0.0
    %1952 = vmatpush1.msra.mxu0 0.0
    %1953 = vmatprep.subr.mxu0 0.0
    %1954 = vmatpush1.msra.mxu0 0.0
    %1955 = vmatprep.subr.mxu0 0.0
    %1956 = vmatpush1.msra.mxu0 0.0
    %1957 = vmatprep.subr.mxu0 0.0
    %1958 = vmatpush1.msra.mxu0 0.0
    %1959 = vmatprep.subr.mxu0 0.0
    %1960 = vmatpush1.msra.mxu0 0.0
    %1961 = vmatprep.subr.mxu0 0.0
    %1962 = vmatpush1.msra.mxu0 0.0
    %1963 = vmatprep.subr.mxu0 0.0
    %1964 = vmatpush1.msra.mxu0 0.0
    %1965 = vmatprep.subr.mxu0 0.0
    %1966 = vmatpush1.msra.mxu0 0.0
    %1967 = vmatprep.subr.mxu0 0.0
    %1968 = vmatpush1.msra.mxu0 0.0
    %1969 = vmatprep.mubr.f32.mxu0 0.0
    %1970 = vmatmul.mubr.f32.gmra.mrb[0].mxu0 %v1903
    %v1971 = vpop.f32.mrb[0].mxu0
    %v1972 = vadd.f32 %v422, %v1971
    %v1973 = vpop.f32.mrb[0].mxu0
    %1974 = vdwg.mxu0
    %v1976 = vsel %vm255, %v1900, 0
    %1978 = vmatprep.subr.mxu0 0.0
    %1979 = vmatpush1.msra.mxu0 %v101
    %1980 = vmatprep.subr.mxu0 0.0
    %1981 = vmatpush1.msra.mxu0 %v102
    %1982 = vmatprep.subr.mxu0 0.0
    %1983 = vmatpush1.msra.mxu0 %v103
    %1984 = vmatprep.subr.mxu0 0.0
    %1985 = vmatpush1.msra.mxu0 %v104
    %1986 = vmatprep.subr.mxu0 0.0
    %1987 = vmatpush1.msra.mxu0 0.0
    %1988 = vmatprep.subr.mxu0 0.0
    %1989 = vmatpush1.msra.mxu0 0.0
    %1990 = vmatprep.subr.mxu0 0.0
    %1991 = vmatpush1.msra.mxu0 0.0
    %1992 = vmatprep.subr.mxu0 0.0
    %1993 = vmatpush1.msra.mxu0 0.0
    %1994 = vmatprep.subr.mxu0 0.0
    %1995 = vmatpush1.msra.mxu0 0.0
    %1996 = vmatprep.subr.mxu0 0.0
    %1997 = vmatpush1.msra.mxu0 0.0
    %1998 = vmatprep.subr.mxu0 0.0
    %1999 = vmatpush1.msra.mxu0 0.0
    %2000 = vmatprep.subr.mxu0 0.0
    %2001 = vmatpush1.msra.mxu0 0.0
    %2002 = vmatprep.subr.mxu0 0.0
    %2003 = vmatpush1.msra.mxu0 0.0
    %2004 = vmatprep.subr.mxu0 0.0
    %2005 = vmatpush1.msra.mxu0 0.0
    %2006 = vmatprep.subr.mxu0 0.0
    %2007 = vmatpush1.msra.mxu0 0.0
    %2008 = vmatprep.subr.mxu0 0.0
    %2009 = vmatpush1.msra.mxu0 0.0
    %2010 = vmatprep.subr.mxu0 0.0
    %2011 = vmatpush1.msra.mxu0 0.0
    %2012 = vmatprep.subr.mxu0 0.0
    %2013 = vmatpush1.msra.mxu0 0.0
    %2014 = vmatprep.subr.mxu0 0.0
    %2015 = vmatpush1.msra.mxu0 0.0
    %2016 = vmatprep.subr.mxu0 0.0
    %2017 = vmatpush1.msra.mxu0 0.0
    %2018 = vmatprep.subr.mxu0 0.0
    %2019 = vmatpush1.msra.mxu0 0.0
    %2020 = vmatprep.subr.mxu0 0.0
    %2021 = vmatpush1.msra.mxu0 0.0
    %2022 = vmatprep.subr.mxu0 0.0
    %2023 = vmatpush1.msra.mxu0 0.0
    %2024 = vmatprep.subr.mxu0 0.0
    %2025 = vmatpush1.msra.mxu0 0.0
    %2026 = vmatprep.subr.mxu0 0.0
    %2027 = vmatpush1.msra.mxu0 0.0
    %2028 = vmatprep.subr.mxu0 0.0
    %2029 = vmatpush1.msra.mxu0 0.0
    %2030 = vmatprep.subr.mxu0 0.0
    %2031 = vmatpush1.msra.mxu0 0.0
    %2032 = vmatprep.subr.mxu0 0.0
    %2033 = vmatpush1.msra.mxu0 0.0
    %2034 = vmatprep.subr.mxu0 0.0
    %2035 = vmatpush1.msra.mxu0 0.0
    %2036 = vmatprep.subr.mxu0 0.0
    %2037 = vmatpush1.msra.mxu0 0.0
    %2038 = vmatprep.subr.mxu0 0.0
    %2039 = vmatpush1.msra.mxu0 0.0
    %2040 = vmatprep.subr.mxu0 0.0
    %2041 = vmatpush1.msra.mxu0 0.0
    %2042 = vmatprep.mubr.f32.mxu0 0.0
    %2043 = vmatmul.mubr.f32.gmra.mrb[0].mxu0 %v1976
    %v2044 = vpop.f32.mrb[0].mxu0
    %v2045 = vadd.f32 0.0, %v2044
    %v2046 = vpop.f32.mrb[0].mxu0
    %2047 = vdwg.mxu0
    %v2048 = vadd.f32 %v1972, %v2045
    %v2049 = vtanh.pop %v2048
    %2050 = vst.msk [vmem:[#allocation2 + $0x38] sm:$0xff] %vm255, %v2049
    %v2051 = vld [vmem:[#allocation2] sm:$0xff]
    %v2052 = vld [vmem:[#allocation2 + $0x8] sm:$0xff]
    %v2053 = vld [vmem:[#allocation2 + $0x10] sm:$0xff]
    %v2054 = vld [vmem:[#allocation2 + $0x18] sm:$0xff]
    %v2055 = vld [vmem:[#allocation2 + $0x20] sm:$0xff]
    %v2056 = vld [vmem:[#allocation2 + $0x28] sm:$0xff]
    %v2057 = vld [vmem:[#allocation2 + $0x30] sm:$0xff]
    %v2058 = vld [vmem:[#allocation2 + $0x38] sm:$0xff]
    %v2060 = vlaneseq
    %v2061 = vshrl.u32 %v2060, 7
    %v2062 = vsub.s32 0, %v2061
    %v2063 = vrot.slane %v110, %v2062
    %v2066 = vsel %vm255, %v2051, 0
    %v2069 = vsel %vm255, %v2052, 0
    %v2072 = vsel %vm255, %v2053, 0
    %v2075 = vsel %vm255, %v2054, 0
    %v2078 = vsel %vm255, %v2055, 0
    %v2081 = vsel %vm255, %v2056, 0
    %v2084 = vsel %vm255, %v2057, 0
    %v2087 = vsel %vm255, %v2058, 0
    %2089 = vmatprep.subr.mxu0 0.0
    %2090 = vmatpush1.msra.mxu0 %v106
    %2091 = vmatprep.subr.mxu0 0.0
    %2092 = vmatpush1.msra.mxu0 %v107
    %2093 = vmatprep.subr.mxu0 0.0
    %2094 = vmatpush1.msra.mxu0 %v108
    %2095 = vmatprep.subr.mxu0 0.0
    %2096 = vmatpush1.msra.mxu0 %v109
    %2097 = vmatprep.subr.mxu0 0.0
    %2098 = vmatpush1.msra.mxu0 0.0
    %2099 = vmatprep.subr.mxu0 0.0
    %2100 = vmatpush1.msra.mxu0 0.0
    %2101 = vmatprep.subr.mxu0 0.0
    %2102 = vmatpush1.msra.mxu0 0.0
    %2103 = vmatprep.subr.mxu0 0.0
    %2104 = vmatpush1.msra.mxu0 0.0
    %2105 = vmatprep.subr.mxu0 0.0
    %2106 = vmatpush1.msra.mxu0 0.0
    %2107 = vmatprep.subr.mxu0 0.0
    %2108 = vmatpush1.msra.mxu0 0.0
    %2109 = vmatprep.subr.mxu0 0.0
    %2110 = vmatpush1.msra.mxu0 0.0
    %2111 = vmatprep.subr.mxu0 0.0
    %2112 = vmatpush1.msra.mxu0 0.0
    %2113 = vmatprep.subr.mxu0 0.0
    %2114 = vmatpush1.msra.mxu0 0.0
    %2115 = vmatprep.subr.mxu0 0.0
    %2116 = vmatpush1.msra.mxu0 0.0
    %2117 = vmatprep.subr.mxu0 0.0
    %2118 = vmatpush1.msra.mxu0 0.0
    %2119 = vmatprep.subr.mxu0 0.0
    %2120 = vmatpush1.msra.mxu0 0.0
    %2121 = vmatprep.subr.mxu0 0.0
    %2122 = vmatpush1.msra.mxu0 0.0
    %2123 = vmatprep.subr.mxu0 0.0
    %2124 = vmatpush1.msra.mxu0 0.0
    %2125 = vmatprep.subr.mxu0 0.0
    %2126 = vmatpush1.msra.mxu0 0.0
    %2127 = vmatprep.subr.mxu0 0.0
    %2128 = vmatpush1.msra.mxu0 0.0
    %2129 = vmatprep.subr.mxu0 0.0
    %2130 = vmatpush1.msra.mxu0 0.0
    %2131 = vmatprep.subr.mxu0 0.0
    %2132 = vmatpush1.msra.mxu0 0.0
    %2133 = vmatprep.subr.mxu0 0.0
    %2134 = vmatpush1.msra.mxu0 0.0
    %2135 = vmatprep.subr.mxu0 0.0
    %2136 = vmatpush1.msra.mxu0 0.0
    %2137 = vmatprep.subr.mxu0 0.0
    %2138 = vmatpush1.msra.mxu0 0.0
    %2139 = vmatprep.subr.mxu0 0.0
    %2140 = vmatpush1.msra.mxu0 0.0
    %2141 = vmatprep.subr.mxu0 0.0
    %2142 = vmatpush1.msra.mxu0 0.0
    %2143 = vmatprep.subr.mxu0 0.0
    %2144 = vmatpush1.msra.mxu0 0.0
    %2145 = vmatprep.subr.mxu0 0.0
    %2146 = vmatpush1.msra.mxu0 0.0
    %2147 = vmatprep.subr.mxu0 0.0
    %2148 = vmatpush1.msra.mxu0 0.0
    %2149 = vmatprep.subr.mxu0 0.0
    %2150 = vmatpush1.msra.mxu0 0.0
    %2151 = vmatprep.subr.mxu0 0.0
    %2152 = vmatpush1.msra.mxu0 0.0
    %2153 = vmatprep.mubr.f32.mxu0 0.0
    %2154 = vmatmul.mubr.f32.gmra.mrb[0].mxu0 %v2066
    %v2155 = vpop.f32.mrb[0].mxu0
    %v2156 = vadd.f32 %v2063, %v2155
    %v2157 = vpop.f32.mrb[0].mxu0
    %2158 = vmatprep.mubr.f32.mxu0 0.0
    %2159 = vmatmul.mubr.f32.gmra.mrb[0].mxu0 %v2069
    %v2160 = vpop.f32.mrb[0].mxu0
    %v2161 = vadd.f32 %v2063, %v2160
    %v2162 = vpop.f32.mrb[0].mxu0
    %2163 = vmatprep.mubr.f32.mxu0 0.0
    %2164 = vmatmul.mubr.f32.gmra.mrb[0].mxu0 %v2072
    %v2165 = vpop.f32.mrb[0].mxu0
    %v2166 = vadd.f32 %v2063, %v2165
    %v2167 = vpop.f32.mrb[0].mxu0
    %2168 = vmatprep.mubr.f32.mxu0 0.0
    %2169 = vmatmul.mubr.f32.gmra.mrb[0].mxu0 %v2075
    %v2170 = vpop.f32.mrb[0].mxu0
    %v2171 = vadd.f32 %v2063, %v2170
    %v2172 = vpop.f32.mrb[0].mxu0
    %2173 = vmatprep.mubr.f32.mxu0 0.0
    %2174 = vmatmul.mubr.f32.gmra.mrb[0].mxu0 %v2078
    %v2175 = vpop.f32.mrb[0].mxu0
    %v2176 = vadd.f32 %v2063, %v2175
    %v2177 = vpop.f32.mrb[0].mxu0
    %2178 = vmatprep.mubr.f32.mxu0 0.0
    %2179 = vmatmul.mubr.f32.gmra.mrb[0].mxu0 %v2081
    %v2180 = vpop.f32.mrb[0].mxu0
    %v2181 = vadd.f32 %v2063, %v2180
    %v2182 = vpop.f32.mrb[0].mxu0
    %2183 = vmatprep.mubr.f32.mxu0 0.0
    %2184 = vmatmul.mubr.f32.gmra.mrb[0].mxu0 %v2084
    %v2185 = vpop.f32.mrb[0].mxu0
    %v2186 = vadd.f32 %v2063, %v2185
    %v2187 = vpop.f32.mrb[0].mxu0
    %2188 = vmatprep.mubr.f32.mxu0 0.0
    %2189 = vmatmul.mubr.f32.gmra.mrb[0].mxu0 %v2087
    %v2190 = vpop.f32.mrb[0].mxu0
    %v2191 = vadd.f32 %v2063, %v2190
    %v2192 = vpop.f32.mrb[0].mxu0
    %2193 = vdwg.mxu0
    %2194 = vst [vmem:[#allocation11] sm:$0xff] %v2156
    %2195 = vst [vmem:[#allocation11 + $0x8] sm:$0xff] %v2161
    %2196 = vst [vmem:[#allocation11 + $0x10] sm:$0xff] %v2166
    %2197 = vst [vmem:[#allocation11 + $0x18] sm:$0xff] %v2171
    %2198 = vst [vmem:[#allocation11 + $0x20] sm:$0xff] %v2176
    %2199 = vst [vmem:[#allocation11 + $0x28] sm:$0xff] %v2181
    %2200 = vst [vmem:[#allocation11 + $0x30] sm:$0xff] %v2186
    %2201 = vst [vmem:[#allocation11 + $0x38] sm:$0xff] %v2191
    // Predicated region
    $region62: #{tpu_custom_call.1} parent=1 // pred_check
      _
    $region63: #{tpu_custom_call.1} parent=1 // pred_check_branch
      %2203 = sbr.rel (0) target = $region65
    $region64: #{tpu_custom_call.1} parent=1 // pred_region
      %s2205 = ssub.s32 1024, 1024
      %2206 = vsyncadd [#allocation5], %s2205
      %s2207 = sshll.u32 [#allocation11], 4
      %s2208 = int_to_ptr.vmem [resolvable:$true] %s2207
      %2213 = dma.vmem_to_hbm [thread:$0]  %s2208, 1024, %s11, [#allocation5], 128, 128, 8
    $region65: #{tpu_custom_call.1} parent=1 // pred_fallthru
      _
    // Predicated region
    $region66: #{tpu_custom_call.1} parent=1 // pred_check
      _
    $region67: #{tpu_custom_call.1} parent=1 // pred_check_branch
      %2215 = sbr.rel (0) target = $region69
    $region68: #{tpu_custom_call.1} parent=1 // pred_region
      %2216 = dma.done [#allocation5], 1024
    $region69: #{tpu_custom_call.1} parent=1 // pred_fallthru
      _
    %2217 = vsyncpa [#allocation4], 1
    %2218 = vsyncpa [#allocation7], 1
    %2219 = vsyncpa [#allocation10], 1
    %2220 = vsyncpa [#allocation5], 1

</llo_original>
